<compile_context>
chip_gen: v7x
topology: tpu7x:2x2x1
jax: 0.10.0
libtpu: 0.0.40
codegen_flags: <defaults>
</compile_context>

<pallas_src>
import functools

import jax
import jax.numpy as jnp
from jax.experimental import pallas as pl
from jax.experimental.pallas import tpu as pltpu


def _gates_to_hc(gates, c, hidden):
    """PyTorch LSTMCell nonlinearity on a precomputed gate block (B, 4H).

    sigmoid/tanh are evaluated once across the full 4H lane width (one vreg at
    H=32) and the gate slices taken afterwards: 2 EUP pushes instead of 4.
    """
    sg = jax.nn.sigmoid(gates)
    tg = jnp.tanh(gates)
    i = sg[:, 0 * hidden:1 * hidden]
    f = sg[:, 1 * hidden:2 * hidden]
    g = tg[:, 2 * hidden:3 * hidden]
    o = sg[:, 3 * hidden:4 * hidden]
    c_new = f * c + i * g
    h_new = o * jnp.tanh(c_new)
    return h_new, c_new


def enc_dec_kernel(x2d_ref,
                   enc_wih_ref, enc_whh_ref, enc_b_ref,
                   dec_wih_ref, dec_whh_ref, dec_b_ref,
                   lin_w_ref, lin_b_ref,
                   out_ref,
                   h_scr_ref,
                   *, seq_len, predict_len, batch, mxu_dtype):
    hidden = enc_whh_ref.shape[0]
    f32 = jnp.float32

    # Weights resident in VMEM; MXU operands optionally bf16, f32 accumulate.
    enc_wih = enc_wih_ref[...].astype(mxu_dtype)
    enc_whh = enc_whh_ref[...].astype(mxu_dtype)
    enc_b = enc_b_ref[...]
    lin_w = lin_w_ref[...]
    lin_b = lin_b_ref[...]
    dec_wih = dec_wih_ref[...]

    # ---- fold the linear readout into the decoder recurrence --------------
    # gates(h) = (h @ lin_w + lin_b) @ dec_wih + h @ dec_whh + dec_b
    #          = h @ (lin_w @ dec_wih + dec_whh) + (lin_b @ dec_wih + dec_b)
    dec_w_fold = (dec_whh_ref[...]
                  + jnp.dot(lin_w, dec_wih, preferred_element_type=f32)
                  ).astype(mxu_dtype)
    dec_b_fold = dec_b_ref[...] + jnp.dot(lin_b, dec_wih,
                                          preferred_element_type=f32)
    # hoist bias broadcast out of the loop
    dec_b_fold = jnp.broadcast_to(dec_b_fold, (batch, 4 * hidden))

    # ---- encoder: input projection hoisted out of the recurrence ----------
    # one (seq_len*batch, in) @ (in, 4H) matmul; bias folded in here once.
    x_proj = (jnp.dot(x2d_ref[...].astype(mxu_dtype), enc_wih,
                      preferred_element_type=f32) + enc_b)

    h = jnp.zeros((batch, hidden), f32)
    c = jnp.zeros((batch, hidden), f32)

    # encoder recurrence, fully unrolled (tiny static trip count)
    for t in range(seq_len):
        gates = (x_proj[t * batch:(t + 1) * batch, :]
                 + jnp.dot(h.astype(mxu_dtype), enc_whh,
                           preferred_element_type=f32))
        h, c = _gates_to_hc(gates, c, hidden)

    # decoder recurrence, fully unrolled; stash h_t, batch the readout after
    for t in range(predict_len):
        h_scr_ref[t * batch:(t + 1) * batch, :] = h
        gates = jnp.dot(h.astype(mxu_dtype), dec_w_fold,
                        preferred_element_type=f32) + dec_b_fold
        h, c = _gates_to_hc(gates, c, hidden)

    # batched readout: one MXU matmul + one dense store instead of
    # predict_len tiny matmuls / masked stores inside the serial loop.
    h_all = h_scr_ref[...]                               # (predict_len*B, H)
    out = jnp.dot(h_all, lin_w, preferred_element_type=f32) + lin_b
    out_ref[...] = out.astype(out_ref.dtype)


def encoder_decoder_forward(x, params, predict_len=30, mxu_dtype=jnp.float32):
    """x: (seq_len, batch, input) -> (predict_len, batch, output).

    mxu_dtype: set to jnp.bfloat16 on v6e/v7x when ~1e-3 tolerance is fine;
    default f32 matches PyTorch numerics. All state / elementwise math stays
    f32 regardless (v5e has no bf16 VPU/EUP path).
    """
    seq_len, batch, input_size = x.shape
    hidden_size = params["enc_whh_t"].shape[0]
    output_size = params["lin_w_t"].shape[1]

    x2d = x.reshape(seq_len * batch, input_size)
    vmem = pl.BlockSpec(memory_space=pltpu.MemorySpace.VMEM)
    kernel = functools.partial(
        enc_dec_kernel, seq_len=seq_len, predict_len=predict_len,
        batch=batch, mxu_dtype=mxu_dtype)

    # TODO(synk): for large batch on v7x, add a batch grid axis with
    # dimension_semantics=("parallel",) so both TensorCores run independent
    # per-batch recurrences; at batch=2 the kernel stays gridless.
    out2d = pl.pallas_call(
        kernel,
        out_shape=jax.ShapeDtypeStruct((predict_len * batch, output_size),
                                       jnp.float32),
        in_specs=[vmem] * 9,
        out_specs=vmem,
        scratch_shapes=[pltpu.VMEM((predict_len * batch, hidden_size),
                                   jnp.float32)],
    )(x2d,
      params["enc_wih_t"], params["enc_whh_t"], params["enc_b"],
      params["dec_wih_t"], params["dec_whh_t"], params["dec_b"],
      params["lin_w_t"], params["lin_b"])
    return out2d.reshape(predict_len, batch, output_size)


def init_params(key, input_size, hidden_size, output_size):
    """Deterministic PyTorch-style uniform(-1/sqrt(H), 1/sqrt(H)) init."""
    k = 1.0 / jnp.sqrt(hidden_size)
    keys = jax.random.split(key, 10)
    u = lambda kk, shape: jax.random.uniform(kk, shape, jnp.float32, -k, k)
    params = {
        # encoder LSTMCell (weights stored pre-transposed: (in, 4H) / (H, 4H))
        "enc_wih_t": u(keys[0], (input_size, 4 * hidden_size)),
        "enc_whh_t": u(keys[1], (hidden_size, 4 * hidden_size)),
        "enc_b": u(keys[2], (1, 4 * hidden_size)) + u(keys[3], (1, 4 * hidden_size)),
        # decoder LSTMCell
        "dec_wih_t": u(keys[4], (output_size, 4 * hidden_size)),
        "dec_whh_t": u(keys[5], (hidden_size, 4 * hidden_size)),
        "dec_b": u(keys[6], (1, 4 * hidden_size)) + u(keys[7], (1, 4 * hidden_size)),
        # linear readout (H, out)
        "lin_w_t": u(keys[8], (hidden_size, output_size)),
        "lin_b": u(keys[9], (1, output_size)),
    }
    return params


def _lstm_cell_ref(x, h, c, w_ih_t, w_hh_t, b):
    """Reference PyTorch-style LSTMCell step (per-step, unfolded)."""
    gates = (jnp.dot(x, w_ih_t, preferred_element_type=jnp.float32)
             + jnp.dot(h, w_hh_t, preferred_element_type=jnp.float32)
             + b)
    H = h.shape[-1]
    i = jax.nn.sigmoid(gates[:, 0 * H:1 * H])
    f = jax.nn.sigmoid(gates[:, 1 * H:2 * H])
    g = jnp.tanh(gates[:, 2 * H:3 * H])
    o = jax.nn.sigmoid(gates[:, 3 * H:4 * H])
    c_new = f * c + i * g
    h_new = o * jnp.tanh(c_new)
    return h_new, c_new


def reference_forward(x, params, predict_len):
    """Pure-JAX reference mirroring the PyTorch forward (no folding)."""
    seq_len, batch, _ = x.shape
    hidden = params["enc_whh_t"].shape[0]
    h = jnp.zeros((batch, hidden), jnp.float32)
    c = jnp.zeros((batch, hidden), jnp.float32)
    for t in range(seq_len):
        h, c = _lstm_cell_ref(x[t], h, c, params["enc_wih_t"],
                              params["enc_whh_t"], params["enc_b"])
    outs = []
    for _ in range(predict_len):
        out = h @ params["lin_w_t"] + params["lin_b"]
        outs.append(out)
        h, c = _lstm_cell_ref(out, h, c, params["dec_wih_t"],
                              params["dec_whh_t"], params["dec_b"])
    return jnp.stack(outs, axis=0)


if __name__ == "__main__":
    # Small shapes implied by the module's forward:
    seq_len, batch, input_size = 8, 2, 4
    hidden_size, output_size = 32, 4
    predict_len = 6

    key = jax.random.PRNGKey(0)
    k_x, k_p = jax.random.split(key)
    x = jax.random.normal(k_x, (seq_len, batch, input_size), jnp.float32)
    params = init_params(k_p, input_size, hidden_size, output_size)

    out = encoder_decoder_forward(x, params, predict_len=predict_len)
    out = jax.block_until_ready(out)

    ref = reference_forward(x, params, predict_len)
    assert out.shape == (predict_len, batch, output_size)
    # the readout fold changes rounding order slightly vs the unfolded
    # reference, so compare at 1e-3 (outputs are O(0.1); a gate-order or fold
    # bug would show up as O(0.1) error).
    assert jnp.allclose(out, ref, atol=1e-3, rtol=1e-3), "mismatch vs reference"

    print("KERNEL_OK")
</pallas_src>

<mosaic_0001>
module attributes {stable_mosaic.version = 11 : i64} {
  func.func @enc_dec_kernel(%arg0: memref<16x4xf32, #tpu.memory_space<vmem>>, %arg1: memref<4x128xf32, #tpu.memory_space<vmem>>, %arg2: memref<32x128xf32, #tpu.memory_space<vmem>>, %arg3: memref<1x128xf32, #tpu.memory_space<vmem>>, %arg4: memref<4x128xf32, #tpu.memory_space<vmem>>, %arg5: memref<32x128xf32, #tpu.memory_space<vmem>>, %arg6: memref<1x128xf32, #tpu.memory_space<vmem>>, %arg7: memref<32x4xf32, #tpu.memory_space<vmem>>, %arg8: memref<1x4xf32, #tpu.memory_space<vmem>>, %arg9: memref<12x4xf32, #tpu.memory_space<vmem>>, %arg10: memref<12x32xf32, #tpu.memory_space<vmem>>) attributes {dimension_semantics = [], scalar_prefetch = 0 : i64, scratch_operands = 1 : i64, tpu.core_type = #tpu.core_type<tc>} {
    %c0 = arith.constant 0 : index
    %c0_0 = arith.constant 0 : index
    %0 = vector.load %arg1[%c0, %c0_0] : memref<4x128xf32, #tpu.memory_space<vmem>>, vector<4x128xf32>
    %c0_1 = arith.constant 0 : index
    %c0_2 = arith.constant 0 : index
    %1 = vector.load %arg2[%c0_1, %c0_2] : memref<32x128xf32, #tpu.memory_space<vmem>>, vector<32x128xf32>
    %c0_3 = arith.constant 0 : index
    %c0_4 = arith.constant 0 : index
    %2 = vector.load %arg3[%c0_3, %c0_4] : memref<1x128xf32, #tpu.memory_space<vmem>>, vector<1x128xf32>
    %c0_5 = arith.constant 0 : index
    %c0_6 = arith.constant 0 : index
    %3 = vector.load %arg7[%c0_5, %c0_6] : memref<32x4xf32, #tpu.memory_space<vmem>>, vector<32x4xf32>
    %c0_7 = arith.constant 0 : index
    %c0_8 = arith.constant 0 : index
    %4 = vector.load %arg8[%c0_7, %c0_8] : memref<1x4xf32, #tpu.memory_space<vmem>>, vector<1x4xf32>
    %c0_9 = arith.constant 0 : index
    %c0_10 = arith.constant 0 : index
    %5 = vector.load %arg4[%c0_9, %c0_10] : memref<4x128xf32, #tpu.memory_space<vmem>>, vector<4x128xf32>
    %c0_11 = arith.constant 0 : index
    %c0_12 = arith.constant 0 : index
    %6 = vector.load %arg5[%c0_11, %c0_12] : memref<32x128xf32, #tpu.memory_space<vmem>>, vector<32x128xf32>
    %cst = arith.constant dense<0.000000e+00> : vector<32x128xf32>
    %7 = tpu.matmul %3, %5, %cst {dimension_numbers = #tpu.dot_dimension_numbers<[1], [0], [0], [1], [0, 0, 1, 1], [], []>} : vector<32x4xf32>, vector<4x128xf32>, vector<32x128xf32> -> vector<32x128xf32>
    %8 = arith.addf %6, %7 : vector<32x128xf32>
    %c0_13 = arith.constant 0 : index
    %c0_14 = arith.constant 0 : index
    %9 = vector.load %arg6[%c0_13, %c0_14] : memref<1x128xf32, #tpu.memory_space<vmem>>, vector<1x128xf32>
    %cst_15 = arith.constant dense<0.000000e+00> : vector<1x128xf32>
    %10 = tpu.matmul %4, %5, %cst_15 {dimension_numbers = #tpu.dot_dimension_numbers<[1], [0], [0], [1], [0, 0, 1, 1], [], []>} : vector<1x4xf32>, vector<4x128xf32>, vector<1x128xf32> -> vector<1x128xf32>
    %11 = arith.addf %9, %10 : vector<1x128xf32>
    %12 = vector.shape_cast %11 : vector<1x128xf32> to vector<1x128xf32>
    %13 = vector.broadcast %12 : vector<1x128xf32> to vector<2x128xf32>
    %c0_16 = arith.constant 0 : index
    %c0_17 = arith.constant 0 : index
    %14 = vector.load %arg0[%c0_16, %c0_17] : memref<16x4xf32, #tpu.memory_space<vmem>>, vector<16x4xf32>
    %cst_18 = arith.constant dense<0.000000e+00> : vector<16x128xf32>
    %15 = tpu.matmul %14, %0, %cst_18 {dimension_numbers = #tpu.dot_dimension_numbers<[1], [0], [0], [1], [0, 0, 1, 1], [], []>} : vector<16x4xf32>, vector<4x128xf32>, vector<16x128xf32> -> vector<16x128xf32>
    %16 = vector.broadcast %2 : vector<1x128xf32> to vector<16x128xf32>
    %17 = arith.addf %15, %16 : vector<16x128xf32>
    %cst_19 = arith.constant 0.000000e+00 : f32
    %18 = vector.broadcast %cst_19 : f32 to vector<2x32xf32>
    %cst_20 = arith.constant 0.000000e+00 : f32
    %19 = vector.broadcast %cst_20 : f32 to vector<2x32xf32>
    %20 = vector.extract_strided_slice %17 {offsets = [0, 0], sizes = [2, 128], strides = [1, 1]} : vector<16x128xf32> to vector<2x128xf32>
    %cst_21 = arith.constant dense<0.000000e+00> : vector<2x128xf32>
    %21 = tpu.matmul %18, %1, %cst_21 {dimension_numbers = #tpu.dot_dimension_numbers<[1], [0], [0], [1], [0, 0, 1, 1], [], []>} : vector<2x32xf32>, vector<32x128xf32>, vector<2x128xf32> -> vector<2x128xf32>
    %22 = arith.addf %20, %21 : vector<2x128xf32>
    %23 = arith.negf %22 : vector<2x128xf32>
    %24 = math.exp %23 : vector<2x128xf32>
    %cst_22 = arith.constant 1.000000e+00 : f32
    %25 = vector.broadcast %cst_22 : f32 to vector<2x128xf32>
    %26 = arith.addf %25, %24 : vector<2x128xf32>
    %27 = arith.divf %25, %26 : vector<2x128xf32>
    %28 = math.tanh %22 : vector<2x128xf32>
    %29 = vector.extract_strided_slice %27 {offsets = [0, 0], sizes = [2, 32], strides = [1, 1]} : vector<2x128xf32> to vector<2x32xf32>
    %30 = vector.extract_strided_slice %27 {offsets = [0, 32], sizes = [2, 32], strides = [1, 1]} : vector<2x128xf32> to vector<2x32xf32>
    %31 = vector.extract_strided_slice %28 {offsets = [0, 64], sizes = [2, 32], strides = [1, 1]} : vector<2x128xf32> to vector<2x32xf32>
    %32 = vector.extract_strided_slice %27 {offsets = [0, 96], sizes = [2, 32], strides = [1, 1]} : vector<2x128xf32> to vector<2x32xf32>
    %33 = arith.mulf %30, %19 : vector<2x32xf32>
    %34 = arith.mulf %29, %31 : vector<2x32xf32>
    %35 = arith.addf %33, %34 : vector<2x32xf32>
    %36 = math.tanh %35 : vector<2x32xf32>
    %37 = arith.mulf %32, %36 : vector<2x32xf32>
    %38 = vector.extract_strided_slice %17 {offsets = [2, 0], sizes = [2, 128], strides = [1, 1]} : vector<16x128xf32> to vector<2x128xf32>
    %cst_23 = arith.constant dense<0.000000e+00> : vector<2x128xf32>
    %39 = tpu.matmul %37, %1, %cst_23 {dimension_numbers = #tpu.dot_dimension_numbers<[1], [0], [0], [1], [0, 0, 1, 1], [], []>} : vector<2x32xf32>, vector<32x128xf32>, vector<2x128xf32> -> vector<2x128xf32>
    %40 = arith.addf %38, %39 : vector<2x128xf32>
    %41 = arith.negf %40 : vector<2x128xf32>
    %42 = math.exp %41 : vector<2x128xf32>
    %cst_24 = arith.constant 1.000000e+00 : f32
    %43 = vector.broadcast %cst_24 : f32 to vector<2x128xf32>
    %44 = arith.addf %43, %42 : vector<2x128xf32>
    %45 = arith.divf %43, %44 : vector<2x128xf32>
    %46 = math.tanh %40 : vector<2x128xf32>
    %47 = vector.extract_strided_slice %45 {offsets = [0, 0], sizes = [2, 32], strides = [1, 1]} : vector<2x128xf32> to vector<2x32xf32>
    %48 = vector.extract_strided_slice %45 {offsets = [0, 32], sizes = [2, 32], strides = [1, 1]} : vector<2x128xf32> to vector<2x32xf32>
    %49 = vector.extract_strided_slice %46 {offsets = [0, 64], sizes = [2, 32], strides = [1, 1]} : vector<2x128xf32> to vector<2x32xf32>
    %50 = vector.extract_strided_slice %45 {offsets = [0, 96], sizes = [2, 32], strides = [1, 1]} : vector<2x128xf32> to vector<2x32xf32>
    %51 = arith.mulf %48, %35 : vector<2x32xf32>
    %52 = arith.mulf %47, %49 : vector<2x32xf32>
    %53 = arith.addf %51, %52 : vector<2x32xf32>
    %54 = math.tanh %53 : vector<2x32xf32>
    %55 = arith.mulf %50, %54 : vector<2x32xf32>
    %56 = vector.extract_strided_slice %17 {offsets = [4, 0], sizes = [2, 128], strides = [1, 1]} : vector<16x128xf32> to vector<2x128xf32>
    %cst_25 = arith.constant dense<0.000000e+00> : vector<2x128xf32>
    %57 = tpu.matmul %55, %1, %cst_25 {dimension_numbers = #tpu.dot_dimension_numbers<[1], [0], [0], [1], [0, 0, 1, 1], [], []>} : vector<2x32xf32>, vector<32x128xf32>, vector<2x128xf32> -> vector<2x128xf32>
    %58 = arith.addf %56, %57 : vector<2x128xf32>
    %59 = arith.negf %58 : vector<2x128xf32>
    %60 = math.exp %59 : vector<2x128xf32>
    %cst_26 = arith.constant 1.000000e+00 : f32
    %61 = vector.broadcast %cst_26 : f32 to vector<2x128xf32>
    %62 = arith.addf %61, %60 : vector<2x128xf32>
    %63 = arith.divf %61, %62 : vector<2x128xf32>
    %64 = math.tanh %58 : vector<2x128xf32>
    %65 = vector.extract_strided_slice %63 {offsets = [0, 0], sizes = [2, 32], strides = [1, 1]} : vector<2x128xf32> to vector<2x32xf32>
    %66 = vector.extract_strided_slice %63 {offsets = [0, 32], sizes = [2, 32], strides = [1, 1]} : vector<2x128xf32> to vector<2x32xf32>
    %67 = vector.extract_strided_slice %64 {offsets = [0, 64], sizes = [2, 32], strides = [1, 1]} : vector<2x128xf32> to vector<2x32xf32>
    %68 = vector.extract_strided_slice %63 {offsets = [0, 96], sizes = [2, 32], strides = [1, 1]} : vector<2x128xf32> to vector<2x32xf32>
    %69 = arith.mulf %66, %53 : vector<2x32xf32>
    %70 = arith.mulf %65, %67 : vector<2x32xf32>
    %71 = arith.addf %69, %70 : vector<2x32xf32>
    %72 = math.tanh %71 : vector<2x32xf32>
    %73 = arith.mulf %68, %72 : vector<2x32xf32>
    %74 = vector.extract_strided_slice %17 {offsets = [6, 0], sizes = [2, 128], strides = [1, 1]} : vector<16x128xf32> to vector<2x128xf32>
    %cst_27 = arith.constant dense<0.000000e+00> : vector<2x128xf32>
    %75 = tpu.matmul %73, %1, %cst_27 {dimension_numbers = #tpu.dot_dimension_numbers<[1], [0], [0], [1], [0, 0, 1, 1], [], []>} : vector<2x32xf32>, vector<32x128xf32>, vector<2x128xf32> -> vector<2x128xf32>
    %76 = arith.addf %74, %75 : vector<2x128xf32>
    %77 = arith.negf %76 : vector<2x128xf32>
    %78 = math.exp %77 : vector<2x128xf32>
    %cst_28 = arith.constant 1.000000e+00 : f32
    %79 = vector.broadcast %cst_28 : f32 to vector<2x128xf32>
    %80 = arith.addf %79, %78 : vector<2x128xf32>
    %81 = arith.divf %79, %80 : vector<2x128xf32>
    %82 = math.tanh %76 : vector<2x128xf32>
    %83 = vector.extract_strided_slice %81 {offsets = [0, 0], sizes = [2, 32], strides = [1, 1]} : vector<2x128xf32> to vector<2x32xf32>
    %84 = vector.extract_strided_slice %81 {offsets = [0, 32], sizes = [2, 32], strides = [1, 1]} : vector<2x128xf32> to vector<2x32xf32>
    %85 = vector.extract_strided_slice %82 {offsets = [0, 64], sizes = [2, 32], strides = [1, 1]} : vector<2x128xf32> to vector<2x32xf32>
    %86 = vector.extract_strided_slice %81 {offsets = [0, 96], sizes = [2, 32], strides = [1, 1]} : vector<2x128xf32> to vector<2x32xf32>
    %87 = arith.mulf %84, %71 : vector<2x32xf32>
    %88 = arith.mulf %83, %85 : vector<2x32xf32>
    %89 = arith.addf %87, %88 : vector<2x32xf32>
    %90 = math.tanh %89 : vector<2x32xf32>
    %91 = arith.mulf %86, %90 : vector<2x32xf32>
    %92 = vector.extract_strided_slice %17 {offsets = [8, 0], sizes = [2, 128], strides = [1, 1]} : vector<16x128xf32> to vector<2x128xf32>
    %cst_29 = arith.constant dense<0.000000e+00> : vector<2x128xf32>
    %93 = tpu.matmul %91, %1, %cst_29 {dimension_numbers = #tpu.dot_dimension_numbers<[1], [0], [0], [1], [0, 0, 1, 1], [], []>} : vector<2x32xf32>, vector<32x128xf32>, vector<2x128xf32> -> vector<2x128xf32>
    %94 = arith.addf %92, %93 : vector<2x128xf32>
    %95 = arith.negf %94 : vector<2x128xf32>
    %96 = math.exp %95 : vector<2x128xf32>
    %cst_30 = arith.constant 1.000000e+00 : f32
    %97 = vector.broadcast %cst_30 : f32 to vector<2x128xf32>
    %98 = arith.addf %97, %96 : vector<2x128xf32>
    %99 = arith.divf %97, %98 : vector<2x128xf32>
    %100 = math.tanh %94 : vector<2x128xf32>
    %101 = vector.extract_strided_slice %99 {offsets = [0, 0], sizes = [2, 32], strides = [1, 1]} : vector<2x128xf32> to vector<2x32xf32>
    %102 = vector.extract_strided_slice %99 {offsets = [0, 32], sizes = [2, 32], strides = [1, 1]} : vector<2x128xf32> to vector<2x32xf32>
    %103 = vector.extract_strided_slice %100 {offsets = [0, 64], sizes = [2, 32], strides = [1, 1]} : vector<2x128xf32> to vector<2x32xf32>
    %104 = vector.extract_strided_slice %99 {offsets = [0, 96], sizes = [2, 32], strides = [1, 1]} : vector<2x128xf32> to vector<2x32xf32>
    %105 = arith.mulf %102, %89 : vector<2x32xf32>
    %106 = arith.mulf %101, %103 : vector<2x32xf32>
    %107 = arith.addf %105, %106 : vector<2x32xf32>
    %108 = math.tanh %107 : vector<2x32xf32>
    %109 = arith.mulf %104, %108 : vector<2x32xf32>
    %110 = vector.extract_strided_slice %17 {offsets = [10, 0], sizes = [2, 128], strides = [1, 1]} : vector<16x128xf32> to vector<2x128xf32>
    %cst_31 = arith.constant dense<0.000000e+00> : vector<2x128xf32>
    %111 = tpu.matmul %109, %1, %cst_31 {dimension_numbers = #tpu.dot_dimension_numbers<[1], [0], [0], [1], [0, 0, 1, 1], [], []>} : vector<2x32xf32>, vector<32x128xf32>, vector<2x128xf32> -> vector<2x128xf32>
    %112 = arith.addf %110, %111 : vector<2x128xf32>
    %113 = arith.negf %112 : vector<2x128xf32>
    %114 = math.exp %113 : vector<2x128xf32>
    %cst_32 = arith.constant 1.000000e+00 : f32
    %115 = vector.broadcast %cst_32 : f32 to vector<2x128xf32>
    %116 = arith.addf %115, %114 : vector<2x128xf32>
    %117 = arith.divf %115, %116 : vector<2x128xf32>
    %118 = math.tanh %112 : vector<2x128xf32>
    %119 = vector.extract_strided_slice %117 {offsets = [0, 0], sizes = [2, 32], strides = [1, 1]} : vector<2x128xf32> to vector<2x32xf32>
    %120 = vector.extract_strided_slice %117 {offsets = [0, 32], sizes = [2, 32], strides = [1, 1]} : vector<2x128xf32> to vector<2x32xf32>
    %121 = vector.extract_strided_slice %118 {offsets = [0, 64], sizes = [2, 32], strides = [1, 1]} : vector<2x128xf32> to vector<2x32xf32>
    %122 = vector.extract_strided_slice %117 {offsets = [0, 96], sizes = [2, 32], strides = [1, 1]} : vector<2x128xf32> to vector<2x32xf32>
    %123 = arith.mulf %120, %107 : vector<2x32xf32>
    %124 = arith.mulf %119, %121 : vector<2x32xf32>
    %125 = arith.addf %123, %124 : vector<2x32xf32>
    %126 = math.tanh %125 : vector<2x32xf32>
    %127 = arith.mulf %122, %126 : vector<2x32xf32>
    %128 = vector.extract_strided_slice %17 {offsets = [12, 0], sizes = [2, 128], strides = [1, 1]} : vector<16x128xf32> to vector<2x128xf32>
    %cst_33 = arith.constant dense<0.000000e+00> : vector<2x128xf32>
    %129 = tpu.matmul %127, %1, %cst_33 {dimension_numbers = #tpu.dot_dimension_numbers<[1], [0], [0], [1], [0, 0, 1, 1], [], []>} : vector<2x32xf32>, vector<32x128xf32>, vector<2x128xf32> -> vector<2x128xf32>
    %130 = arith.addf %128, %129 : vector<2x128xf32>
    %131 = arith.negf %130 : vector<2x128xf32>
    %132 = math.exp %131 : vector<2x128xf32>
    %cst_34 = arith.constant 1.000000e+00 : f32
    %133 = vector.broadcast %cst_34 : f32 to vector<2x128xf32>
    %134 = arith.addf %133, %132 : vector<2x128xf32>
    %135 = arith.divf %133, %134 : vector<2x128xf32>
    %136 = math.tanh %130 : vector<2x128xf32>
    %137 = vector.extract_strided_slice %135 {offsets = [0, 0], sizes = [2, 32], strides = [1, 1]} : vector<2x128xf32> to vector<2x32xf32>
    %138 = vector.extract_strided_slice %135 {offsets = [0, 32], sizes = [2, 32], strides = [1, 1]} : vector<2x128xf32> to vector<2x32xf32>
    %139 = vector.extract_strided_slice %136 {offsets = [0, 64], sizes = [2, 32], strides = [1, 1]} : vector<2x128xf32> to vector<2x32xf32>
    %140 = vector.extract_strided_slice %135 {offsets = [0, 96], sizes = [2, 32], strides = [1, 1]} : vector<2x128xf32> to vector<2x32xf32>
    %141 = arith.mulf %138, %125 : vector<2x32xf32>
    %142 = arith.mulf %137, %139 : vector<2x32xf32>
    %143 = arith.addf %141, %142 : vector<2x32xf32>
    %144 = math.tanh %143 : vector<2x32xf32>
    %145 = arith.mulf %140, %144 : vector<2x32xf32>
    %146 = vector.extract_strided_slice %17 {offsets = [14, 0], sizes = [2, 128], strides = [1, 1]} : vector<16x128xf32> to vector<2x128xf32>
    %cst_35 = arith.constant dense<0.000000e+00> : vector<2x128xf32>
    %147 = tpu.matmul %145, %1, %cst_35 {dimension_numbers = #tpu.dot_dimension_numbers<[1], [0], [0], [1], [0, 0, 1, 1], [], []>} : vector<2x32xf32>, vector<32x128xf32>, vector<2x128xf32> -> vector<2x128xf32>
    %148 = arith.addf %146, %147 : vector<2x128xf32>
    %149 = arith.negf %148 : vector<2x128xf32>
    %150 = math.exp %149 : vector<2x128xf32>
    %cst_36 = arith.constant 1.000000e+00 : f32
    %151 = vector.broadcast %cst_36 : f32 to vector<2x128xf32>
    %152 = arith.addf %151, %150 : vector<2x128xf32>
    %153 = arith.divf %151, %152 : vector<2x128xf32>
    %154 = math.tanh %148 : vector<2x128xf32>
    %155 = vector.extract_strided_slice %153 {offsets = [0, 0], sizes = [2, 32], strides = [1, 1]} : vector<2x128xf32> to vector<2x32xf32>
    %156 = vector.extract_strided_slice %153 {offsets = [0, 32], sizes = [2, 32], strides = [1, 1]} : vector<2x128xf32> to vector<2x32xf32>
    %157 = vector.extract_strided_slice %154 {offsets = [0, 64], sizes = [2, 32], strides = [1, 1]} : vector<2x128xf32> to vector<2x32xf32>
    %158 = vector.extract_strided_slice %153 {offsets = [0, 96], sizes = [2, 32], strides = [1, 1]} : vector<2x128xf32> to vector<2x32xf32>
    %159 = arith.mulf %156, %143 : vector<2x32xf32>
    %160 = arith.mulf %155, %157 : vector<2x32xf32>
    %161 = arith.addf %159, %160 : vector<2x32xf32>
    %162 = math.tanh %161 : vector<2x32xf32>
    %163 = arith.mulf %158, %162 : vector<2x32xf32>
    %c0_37 = arith.constant 0 : index
    %c0_38 = arith.constant 0 : index
    %164 = vector.load %arg10[%c0_37, %c0_38] : memref<12x32xf32, #tpu.memory_space<vmem>>, vector<2x32xf32>
    tpu.vector_store %arg10[%c0_37, %c0_38], %163 {strides = array<i32>} : memref<12x32xf32, #tpu.memory_space<vmem>>, vector<2x32xf32>,
    %cst_39 = arith.constant dense<0.000000e+00> : vector<2x128xf32>
    %165 = tpu.matmul %163, %8, %cst_39 {dimension_numbers = #tpu.dot_dimension_numbers<[1], [0], [0], [1], [0, 0, 1, 1], [], []>} : vector<2x32xf32>, vector<32x128xf32>, vector<2x128xf32> -> vector<2x128xf32>
    %166 = arith.addf %165, %13 : vector<2x128xf32>
    %167 = arith.negf %166 : vector<2x128xf32>
    %168 = math.exp %167 : vector<2x128xf32>
    %cst_40 = arith.constant 1.000000e+00 : f32
    %169 = vector.broadcast %cst_40 : f32 to vector<2x128xf32>
    %170 = arith.addf %169, %168 : vector<2x128xf32>
    %171 = arith.divf %169, %170 : vector<2x128xf32>
    %172 = math.tanh %166 : vector<2x128xf32>
    %173 = vector.extract_strided_slice %171 {offsets = [0, 0], sizes = [2, 32], strides = [1, 1]} : vector<2x128xf32> to vector<2x32xf32>
    %174 = vector.extract_strided_slice %171 {offsets = [0, 32], sizes = [2, 32], strides = [1, 1]} : vector<2x128xf32> to vector<2x32xf32>
    %175 = vector.extract_strided_slice %172 {offsets = [0, 64], sizes = [2, 32], strides = [1, 1]} : vector<2x128xf32> to vector<2x32xf32>
    %176 = vector.extract_strided_slice %171 {offsets = [0, 96], sizes = [2, 32], strides = [1, 1]} : vector<2x128xf32> to vector<2x32xf32>
    %177 = arith.mulf %174, %161 : vector<2x32xf32>
    %178 = arith.mulf %173, %175 : vector<2x32xf32>
    %179 = arith.addf %177, %178 : vector<2x32xf32>
    %180 = math.tanh %179 : vector<2x32xf32>
    %181 = arith.mulf %176, %180 : vector<2x32xf32>
    %c2 = arith.constant 2 : index
    %c0_41 = arith.constant 0 : index
    %182 = vector.load %arg10[%c2, %c0_41] : memref<12x32xf32, #tpu.memory_space<vmem>>, vector<2x32xf32>
    tpu.vector_store %arg10[%c2, %c0_41], %181 {strides = array<i32>} : memref<12x32xf32, #tpu.memory_space<vmem>>, vector<2x32xf32>,
    %cst_42 = arith.constant dense<0.000000e+00> : vector<2x128xf32>
    %183 = tpu.matmul %181, %8, %cst_42 {dimension_numbers = #tpu.dot_dimension_numbers<[1], [0], [0], [1], [0, 0, 1, 1], [], []>} : vector<2x32xf32>, vector<32x128xf32>, vector<2x128xf32> -> vector<2x128xf32>
    %184 = arith.addf %183, %13 : vector<2x128xf32>
    %185 = arith.negf %184 : vector<2x128xf32>
    %186 = math.exp %185 : vector<2x128xf32>
    %cst_43 = arith.constant 1.000000e+00 : f32
    %187 = vector.broadcast %cst_43 : f32 to vector<2x128xf32>
    %188 = arith.addf %187, %186 : vector<2x128xf32>
    %189 = arith.divf %187, %188 : vector<2x128xf32>
    %190 = math.tanh %184 : vector<2x128xf32>
    %191 = vector.extract_strided_slice %189 {offsets = [0, 0], sizes = [2, 32], strides = [1, 1]} : vector<2x128xf32> to vector<2x32xf32>
    %192 = vector.extract_strided_slice %189 {offsets = [0, 32], sizes = [2, 32], strides = [1, 1]} : vector<2x128xf32> to vector<2x32xf32>
    %193 = vector.extract_strided_slice %190 {offsets = [0, 64], sizes = [2, 32], strides = [1, 1]} : vector<2x128xf32> to vector<2x32xf32>
    %194 = vector.extract_strided_slice %189 {offsets = [0, 96], sizes = [2, 32], strides = [1, 1]} : vector<2x128xf32> to vector<2x32xf32>
    %195 = arith.mulf %192, %179 : vector<2x32xf32>
    %196 = arith.mulf %191, %193 : vector<2x32xf32>
    %197 = arith.addf %195, %196 : vector<2x32xf32>
    %198 = math.tanh %197 : vector<2x32xf32>
    %199 = arith.mulf %194, %198 : vector<2x32xf32>
    %c4 = arith.constant 4 : index
    %c0_44 = arith.constant 0 : index
    %200 = vector.load %arg10[%c4, %c0_44] : memref<12x32xf32, #tpu.memory_space<vmem>>, vector<2x32xf32>
    tpu.vector_store %arg10[%c4, %c0_44], %199 {strides = array<i32>} : memref<12x32xf32, #tpu.memory_space<vmem>>, vector<2x32xf32>,
    %cst_45 = arith.constant dense<0.000000e+00> : vector<2x128xf32>
    %201 = tpu.matmul %199, %8, %cst_45 {dimension_numbers = #tpu.dot_dimension_numbers<[1], [0], [0], [1], [0, 0, 1, 1], [], []>} : vector<2x32xf32>, vector<32x128xf32>, vector<2x128xf32> -> vector<2x128xf32>
    %202 = arith.addf %201, %13 : vector<2x128xf32>
    %203 = arith.negf %202 : vector<2x128xf32>
    %204 = math.exp %203 : vector<2x128xf32>
    %cst_46 = arith.constant 1.000000e+00 : f32
    %205 = vector.broadcast %cst_46 : f32 to vector<2x128xf32>
    %206 = arith.addf %205, %204 : vector<2x128xf32>
    %207 = arith.divf %205, %206 : vector<2x128xf32>
    %208 = math.tanh %202 : vector<2x128xf32>
    %209 = vector.extract_strided_slice %207 {offsets = [0, 0], sizes = [2, 32], strides = [1, 1]} : vector<2x128xf32> to vector<2x32xf32>
    %210 = vector.extract_strided_slice %207 {offsets = [0, 32], sizes = [2, 32], strides = [1, 1]} : vector<2x128xf32> to vector<2x32xf32>
    %211 = vector.extract_strided_slice %208 {offsets = [0, 64], sizes = [2, 32], strides = [1, 1]} : vector<2x128xf32> to vector<2x32xf32>
    %212 = vector.extract_strided_slice %207 {offsets = [0, 96], sizes = [2, 32], strides = [1, 1]} : vector<2x128xf32> to vector<2x32xf32>
    %213 = arith.mulf %210, %197 : vector<2x32xf32>
    %214 = arith.mulf %209, %211 : vector<2x32xf32>
    %215 = arith.addf %213, %214 : vector<2x32xf32>
    %216 = math.tanh %215 : vector<2x32xf32>
    %217 = arith.mulf %212, %216 : vector<2x32xf32>
    %c6 = arith.constant 6 : index
    %c0_47 = arith.constant 0 : index
    %218 = vector.load %arg10[%c6, %c0_47] : memref<12x32xf32, #tpu.memory_space<vmem>>, vector<2x32xf32>
    tpu.vector_store %arg10[%c6, %c0_47], %217 {strides = array<i32>} : memref<12x32xf32, #tpu.memory_space<vmem>>, vector<2x32xf32>,
    %cst_48 = arith.constant dense<0.000000e+00> : vector<2x128xf32>
    %219 = tpu.matmul %217, %8, %cst_48 {dimension_numbers = #tpu.dot_dimension_numbers<[1], [0], [0], [1], [0, 0, 1, 1], [], []>} : vector<2x32xf32>, vector<32x128xf32>, vector<2x128xf32> -> vector<2x128xf32>
    %220 = arith.addf %219, %13 : vector<2x128xf32>
    %221 = arith.negf %220 : vector<2x128xf32>
    %222 = math.exp %221 : vector<2x128xf32>
    %cst_49 = arith.constant 1.000000e+00 : f32
    %223 = vector.broadcast %cst_49 : f32 to vector<2x128xf32>
    %224 = arith.addf %223, %222 : vector<2x128xf32>
    %225 = arith.divf %223, %224 : vector<2x128xf32>
    %226 = math.tanh %220 : vector<2x128xf32>
    %227 = vector.extract_strided_slice %225 {offsets = [0, 0], sizes = [2, 32], strides = [1, 1]} : vector<2x128xf32> to vector<2x32xf32>
    %228 = vector.extract_strided_slice %225 {offsets = [0, 32], sizes = [2, 32], strides = [1, 1]} : vector<2x128xf32> to vector<2x32xf32>
    %229 = vector.extract_strided_slice %226 {offsets = [0, 64], sizes = [2, 32], strides = [1, 1]} : vector<2x128xf32> to vector<2x32xf32>
    %230 = vector.extract_strided_slice %225 {offsets = [0, 96], sizes = [2, 32], strides = [1, 1]} : vector<2x128xf32> to vector<2x32xf32>
    %231 = arith.mulf %228, %215 : vector<2x32xf32>
    %232 = arith.mulf %227, %229 : vector<2x32xf32>
    %233 = arith.addf %231, %232 : vector<2x32xf32>
    %234 = math.tanh %233 : vector<2x32xf32>
    %235 = arith.mulf %230, %234 : vector<2x32xf32>
    %c8 = arith.constant 8 : index
    %c0_50 = arith.constant 0 : index
    %236 = vector.load %arg10[%c8, %c0_50] : memref<12x32xf32, #tpu.memory_space<vmem>>, vector<2x32xf32>
    tpu.vector_store %arg10[%c8, %c0_50], %235 {strides = array<i32>} : memref<12x32xf32, #tpu.memory_space<vmem>>, vector<2x32xf32>,
    %cst_51 = arith.constant dense<0.000000e+00> : vector<2x128xf32>
    %237 = tpu.matmul %235, %8, %cst_51 {dimension_numbers = #tpu.dot_dimension_numbers<[1], [0], [0], [1], [0, 0, 1, 1], [], []>} : vector<2x32xf32>, vector<32x128xf32>, vector<2x128xf32> -> vector<2x128xf32>
    %238 = arith.addf %237, %13 : vector<2x128xf32>
    %239 = arith.negf %238 : vector<2x128xf32>
    %240 = math.exp %239 : vector<2x128xf32>
    %cst_52 = arith.constant 1.000000e+00 : f32
    %241 = vector.broadcast %cst_52 : f32 to vector<2x128xf32>
    %242 = arith.addf %241, %240 : vector<2x128xf32>
    %243 = arith.divf %241, %242 : vector<2x128xf32>
    %244 = math.tanh %238 : vector<2x128xf32>
    %245 = vector.extract_strided_slice %243 {offsets = [0, 0], sizes = [2, 32], strides = [1, 1]} : vector<2x128xf32> to vector<2x32xf32>
    %246 = vector.extract_strided_slice %243 {offsets = [0, 32], sizes = [2, 32], strides = [1, 1]} : vector<2x128xf32> to vector<2x32xf32>
    %247 = vector.extract_strided_slice %244 {offsets = [0, 64], sizes = [2, 32], strides = [1, 1]} : vector<2x128xf32> to vector<2x32xf32>
    %248 = vector.extract_strided_slice %243 {offsets = [0, 96], sizes = [2, 32], strides = [1, 1]} : vector<2x128xf32> to vector<2x32xf32>
    %249 = arith.mulf %246, %233 : vector<2x32xf32>
    %250 = arith.mulf %245, %247 : vector<2x32xf32>
    %251 = arith.addf %249, %250 : vector<2x32xf32>
    %252 = math.tanh %251 : vector<2x32xf32>
    %253 = arith.mulf %248, %252 : vector<2x32xf32>
    %c10 = arith.constant 10 : index
    %c0_53 = arith.constant 0 : index
    %254 = vector.load %arg10[%c10, %c0_53] : memref<12x32xf32, #tpu.memory_space<vmem>>, vector<2x32xf32>
    tpu.vector_store %arg10[%c10, %c0_53], %253 {strides = array<i32>} : memref<12x32xf32, #tpu.memory_space<vmem>>, vector<2x32xf32>,
    %c0_54 = arith.constant 0 : index
    %c0_55 = arith.constant 0 : index
    %255 = vector.load %arg10[%c0_54, %c0_55] : memref<12x32xf32, #tpu.memory_space<vmem>>, vector<12x32xf32>
    %cst_56 = arith.constant dense<0.000000e+00> : vector<12x4xf32>
    %256 = tpu.matmul %255, %3, %cst_56 {dimension_numbers = #tpu.dot_dimension_numbers<[1], [0], [0], [1], [0, 0, 1, 1], [], []>} : vector<12x32xf32>, vector<32x4xf32>, vector<12x4xf32> -> vector<12x4xf32>
    %257 = vector.broadcast %4 : vector<1x4xf32> to vector<12x4xf32>
    %258 = arith.addf %256, %257 : vector<12x4xf32>
    %c0_57 = arith.constant 0 : index
    %c0_58 = arith.constant 0 : index
    %259 = vector.load %arg9[%c0_57, %c0_58] : memref<12x4xf32, #tpu.memory_space<vmem>>, vector<12x4xf32>
    tpu.vector_store %arg9[%c0_57, %c0_58], %258 {strides = array<i32>} : memref<12x4xf32, #tpu.memory_space<vmem>>, vector<12x4xf32>,
    return
  }
}

</mosaic_0001>

<llo_original>
// kernel: tpu_custom_call.1
$region0: #{tpu_custom_call.1}
  #allocation0 [shape = 'u32[]', space=smem, size = 0x4, offset = 0x4, fixed_abs, tag = 'smem constant byte address 0x4 - core index']
  #allocation1 [shape = 'u32[144,128]{1,0:T(1,128)}', space=vmem, size = 0x12000, scoped, tag = 'internal scratch']
  #allocation2 [shape = 'f32[12,32]{1,0:T(8,128)}', space=vmem, size = 0x2000, scoped, tag = 'scratch operand']
  %s0 = inlined_call_operand.vmem [shape: f32[16,4], index: 0, kind: input, shape index: {}]
  %s1 = inlined_call_operand.hbm [shape: f32[4,128], index: 1, kind: input, shape index: {}]
  %s2 = inlined_call_operand.vmem [shape: f32[32,128], index: 2, kind: input, shape index: {}]
  %s3 = inlined_call_operand.vmem [shape: f32[1,128], index: 3, kind: input, shape index: {}]
  %s4 = inlined_call_operand.hbm [shape: f32[4,128], index: 4, kind: input, shape index: {}]
  %s5 = inlined_call_operand.vmem [shape: f32[32,128], index: 5, kind: input, shape index: {}]
  %s6 = inlined_call_operand.vmem [shape: f32[1,128], index: 6, kind: input, shape index: {}]
  %s7 = inlined_call_operand.vmem [shape: f32[32,4], index: 7, kind: input, shape index: {}]
  %s8 = inlined_call_operand.vmem [shape: f32[1,4], index: 8, kind: input, shape index: {}]
  %s9 = inlined_call_operand.vmem [shape: f32[12,4], index: 9, kind: output, shape index: {}]
  %s10 = sld [smem:[#allocation0]]
  $region54: #{tpu_custom_call.1} parent=0
    _
  %s12 = ssub.s32 1, %s10
  %s13 = scalar_select 0, %s12, %s10
  $region1: #{tpu_custom_call.1} parent=0
    #allocation3 [shape = 'u8[2048]{0}', space=vmem, size = 0x800, scoped, tag = 'input window, operand 1, single buffered']
    #allocation4 [shape = 's32[1]{0}', space=sflag, size = 0x4, scoped, tag = 'scoped memory for tpu_custom_call.1']
    #allocation5 [shape = 'u8[2048]{0}', space=vmem, size = 0x800, scoped, tag = 'input window, operand 4, single buffered']
    #allocation6 [shape = 's32[1]{0}', space=sflag, size = 0x4, scoped, tag = 'scoped memory for tpu_custom_call.1']
    %14 = vsyncpa [#allocation4], 0
    %15 = vsyncpa [#allocation6], 0
    // Predicated region
    $region2: #{tpu_custom_call.1} parent=1 // pred_check
      _
    $region3: #{tpu_custom_call.1} parent=1 // pred_check_branch
      %17 = sbr.rel (0) target = $region5
    $region4: #{tpu_custom_call.1} parent=1 // pred_region
      _
    $region5: #{tpu_custom_call.1} parent=1 // pred_fallthru
      _
    // Predicated region
    $region6: #{tpu_custom_call.1} parent=1 // pred_check
      _
    $region7: #{tpu_custom_call.1} parent=1 // pred_check_branch
      %19 = sbr.rel (0) target = $region9
    $region8: #{tpu_custom_call.1} parent=1 // pred_region
      %s21 = ssub.s32 64, 64
      %22 = vsyncadd [#allocation4], %s21
      %s24 = sshll.u32 [#allocation3], 4
      %s25 = int_to_ptr.vmem [resolvable:$true] %s24
      %27 = dma.hbm_to_vmem [thread:$0]  %s1, 64, %s25, [#allocation4]
    $region9: #{tpu_custom_call.1} parent=1 // pred_fallthru
      _
    // Predicated region
    $region10: #{tpu_custom_call.1} parent=1 // pred_check
      _
    $region11: #{tpu_custom_call.1} parent=1 // pred_check_branch
      %29 = sbr.rel (0) target = $region13
    $region12: #{tpu_custom_call.1} parent=1 // pred_region
      _
    $region13: #{tpu_custom_call.1} parent=1 // pred_fallthru
      _
    // Predicated region
    $region14: #{tpu_custom_call.1} parent=1 // pred_check
      _
    $region15: #{tpu_custom_call.1} parent=1 // pred_check_branch
      %31 = sbr.rel (0) target = $region17
    $region16: #{tpu_custom_call.1} parent=1 // pred_region
      _
    $region17: #{tpu_custom_call.1} parent=1 // pred_fallthru
      _
    // Predicated region
    $region18: #{tpu_custom_call.1} parent=1 // pred_check
      _
    $region19: #{tpu_custom_call.1} parent=1 // pred_check_branch
      %33 = sbr.rel (0) target = $region21
    $region20: #{tpu_custom_call.1} parent=1 // pred_region
      %s35 = ssub.s32 64, 64
      %36 = vsyncadd [#allocation6], %s35
      %s38 = sshll.u32 [#allocation5], 4
      %s39 = int_to_ptr.vmem [resolvable:$true] %s38
      %41 = dma.hbm_to_vmem [thread:$0]  %s4, 64, %s39, [#allocation6]
    $region21: #{tpu_custom_call.1} parent=1 // pred_fallthru
      _
    // Predicated region
    $region22: #{tpu_custom_call.1} parent=1 // pred_check
      _
    $region23: #{tpu_custom_call.1} parent=1 // pred_check_branch
      %43 = sbr.rel (0) target = $region25
    $region24: #{tpu_custom_call.1} parent=1 // pred_region
      _
    $region25: #{tpu_custom_call.1} parent=1 // pred_fallthru
      _
    // Predicated region
    $region26: #{tpu_custom_call.1} parent=1 // pred_check
      _
    $region27: #{tpu_custom_call.1} parent=1 // pred_check_branch
      %45 = sbr.rel (0) target = $region29
    $region28: #{tpu_custom_call.1} parent=1 // pred_region
      _
    $region29: #{tpu_custom_call.1} parent=1 // pred_fallthru
      _
    // Predicated region
    $region30: #{tpu_custom_call.1} parent=1 // pred_check
      _
    $region31: #{tpu_custom_call.1} parent=1 // pred_check_branch
      %47 = sbr.rel (0) target = $region33
    $region32: #{tpu_custom_call.1} parent=1 // pred_region
      _
    $region33: #{tpu_custom_call.1} parent=1 // pred_fallthru
      _
    // Predicated region
    $region34: #{tpu_custom_call.1} parent=1 // pred_check
      _
    $region35: #{tpu_custom_call.1} parent=1 // pred_check_branch
      %49 = sbr.rel (0) target = $region37
    $region36: #{tpu_custom_call.1} parent=1 // pred_region
      _
    $region37: #{tpu_custom_call.1} parent=1 // pred_fallthru
      _
    // Predicated region
    $region38: #{tpu_custom_call.1} parent=1 // pred_check
      _
    $region39: #{tpu_custom_call.1} parent=1 // pred_check_branch
      %51 = sbr.rel (0) target = $region41
    $region40: #{tpu_custom_call.1} parent=1 // pred_region
      %52 = dma.done [#allocation4], 64
    $region41: #{tpu_custom_call.1} parent=1 // pred_fallthru
      _
    // Predicated region
    $region42: #{tpu_custom_call.1} parent=1 // pred_check
      _
    $region43: #{tpu_custom_call.1} parent=1 // pred_check_branch
      %54 = sbr.rel (0) target = $region45
    $region44: #{tpu_custom_call.1} parent=1 // pred_region
      %55 = dma.done [#allocation6], 64
    $region45: #{tpu_custom_call.1} parent=1 // pred_fallthru
      _
    %v56 = vld [vmem:[#allocation3] sm:$0xf]
    %v57 = vld [vmem:[%s2] sm:$0xff]
    %v58 = vld [vmem:[%s2 + $0x8] sm:$0xff]
    %v59 = vld [vmem:[%s2 + $0x10] sm:$0xff]
    %v60 = vld [vmem:[%s2 + $0x18] sm:$0xff]
    %v61 = vld [vmem:[%s3] sm:$0x1]
    %v62 = vld [vmem:[%s7] sm:$0xff]
    %v63 = vld [vmem:[%s7 + $0x8] sm:$0xff]
    %v64 = vld [vmem:[%s7 + $0x10] sm:$0xff]
    %v65 = vld [vmem:[%s7 + $0x18] sm:$0xff]
    %v66 = vld [vmem:[%s8] sm:$0x1]
    %v67 = vld [vmem:[#allocation5] sm:$0xf]
    %v68 = vld [vmem:[%s5] sm:$0xff]
    %v69 = vld [vmem:[%s5 + $0x8] sm:$0xff]
    %v70 = vld [vmem:[%s5 + $0x10] sm:$0xff]
    %v71 = vld [vmem:[%s5 + $0x18] sm:$0xff]
    %vm72 = vcmask 31744
    %v74 = vsel %vm72, %v62, 0
    %v77 = vsel %vm72, %v63, 0
    %v80 = vsel %vm72, %v64, 0
    %v83 = vsel %vm72, %v65, 0
    %vm85 = vcmask 1043456
    %v87 = vsel %vm85, %v67, 0
    %89 = vmatprep.subr.mxu0 0.0
    %90 = vmatpush1.msra.mxu0 %v87
    %91 = vmatprep.subr.mxu0 0.0
    %92 = vmatpush1.msra.mxu0 0.0
    %93 = vmatprep.subr.mxu0 0.0
    %94 = vmatpush1.msra.mxu0 0.0
    %95 = vmatprep.subr.mxu0 0.0
    %96 = vmatpush1.msra.mxu0 0.0
    %97 = vmatprep.subr.mxu0 0.0
    %98 = vmatpush1.msra.mxu0 0.0
    %99 = vmatprep.subr.mxu0 0.0
    %100 = vmatpush1.msra.mxu0 0.0
    %101 = vmatprep.subr.mxu0 0.0
    %102 = vmatpush1.msra.mxu0 0.0
    %103 = vmatprep.subr.mxu0 0.0
    %104 = vmatpush1.msra.mxu0 0.0
    %105 = vmatprep.subr.mxu0 0.0
    %106 = vmatpush1.msra.mxu0 0.0
    %107 = vmatprep.subr.mxu0 0.0
    %108 = vmatpush1.msra.mxu0 0.0
    %109 = vmatprep.subr.mxu0 0.0
    %110 = vmatpush1.msra.mxu0 0.0
    %111 = vmatprep.subr.mxu0 0.0
    %112 = vmatpush1.msra.mxu0 0.0
    %113 = vmatprep.subr.mxu0 0.0
    %114 = vmatpush1.msra.mxu0 0.0
    %115 = vmatprep.subr.mxu0 0.0
    %116 = vmatpush1.msra.mxu0 0.0
    %117 = vmatprep.subr.mxu0 0.0
    %118 = vmatpush1.msra.mxu0 0.0
    %119 = vmatprep.subr.mxu0 0.0
    %120 = vmatpush1.msra.mxu0 0.0
    %121 = vmatprep.subr.mxu0 0.0
    %122 = vmatpush1.msra.mxu0 0.0
    %123 = vmatprep.subr.mxu0 0.0
    %124 = vmatpush1.msra.mxu0 0.0
    %125 = vmatprep.subr.mxu0 0.0
    %126 = vmatpush1.msra.mxu0 0.0
    %127 = vmatprep.subr.mxu0 0.0
    %128 = vmatpush1.msra.mxu0 0.0
    %129 = vmatprep.subr.mxu0 0.0
    %130 = vmatpush1.msra.mxu0 0.0
    %131 = vmatprep.subr.mxu0 0.0
    %132 = vmatpush1.msra.mxu0 0.0
    %133 = vmatprep.subr.mxu0 0.0
    %134 = vmatpush1.msra.mxu0 0.0
    %135 = vmatprep.subr.mxu0 0.0
    %136 = vmatpush1.msra.mxu0 0.0
    %137 = vmatprep.subr.mxu0 0.0
    %138 = vmatpush1.msra.mxu0 0.0
    %139 = vmatprep.subr.mxu0 0.0
    %140 = vmatpush1.msra.mxu0 0.0
    %141 = vmatprep.subr.mxu0 0.0
    %142 = vmatpush1.msra.mxu0 0.0
    %143 = vmatprep.subr.mxu0 0.0
    %144 = vmatpush1.msra.mxu0 0.0
    %145 = vmatprep.subr.mxu0 0.0
    %146 = vmatpush1.msra.mxu0 0.0
    %147 = vmatprep.subr.mxu0 0.0
    %148 = vmatpush1.msra.mxu0 0.0
    %149 = vmatprep.subr.mxu0 0.0
    %150 = vmatpush1.msra.mxu0 0.0
    %151 = vmatprep.subr.mxu0 0.0
    %152 = vmatpush1.msra.mxu0 0.0
    %153 = vmatprep.mubr.f32.mxu0 0.0
    %154 = vmatmul.mubr.f32.gmra.mrb[0].mxu0 %v74
    %v155 = vpop.f32.mrb[0].mxu0
    %v156 = vadd.f32 0.0, %v155
    %v157 = vpop.f32.mrb[0].mxu0
    %158 = vmatprep.mubr.f32.mxu0 0.0
    %159 = vmatmul.mubr.f32.gmra.mrb[0].mxu0 %v77
    %v160 = vpop.f32.mrb[0].mxu0
    %v161 = vadd.f32 0.0, %v160
    %v162 = vpop.f32.mrb[0].mxu0
    %163 = vmatprep.mubr.f32.mxu0 0.0
    %164 = vmatmul.mubr.f32.gmra.mrb[0].mxu0 %v80
    %v165 = vpop.f32.mrb[0].mxu0
    %v166 = vadd.f32 0.0, %v165
    %v167 = vpop.f32.mrb[0].mxu0
    %168 = vmatprep.mubr.f32.mxu0 0.0
    %169 = vmatmul.mubr.f32.gmra.mrb[0].mxu0 %v83
    %v170 = vpop.f32.mrb[0].mxu0
    %v171 = vadd.f32 0.0, %v170
    %v172 = vpop.f32.mrb[0].mxu0
    %173 = vdwg.mxu0
    %v174 = vadd.f32 %v68, %v156
    %v175 = vadd.f32 %v69, %v161
    %v176 = vadd.f32 %v70, %v166
    %v177 = vadd.f32 %v71, %v171
    %v178 = vld [vmem:[%s6] sm:$0x1]
    %v180 = vsel %vm72, %v66, 0
    %182 = vmatprep.subr.mxu0 0.0
    %183 = vmatpush1.msra.mxu0 %v87
    %184 = vmatprep.subr.mxu0 0.0
    %185 = vmatpush1.msra.mxu0 0.0
    %186 = vmatprep.subr.mxu0 0.0
    %187 = vmatpush1.msra.mxu0 0.0
    %188 = vmatprep.subr.mxu0 0.0
    %189 = vmatpush1.msra.mxu0 0.0
    %190 = vmatprep.subr.mxu0 0.0
    %191 = vmatpush1.msra.mxu0 0.0
    %192 = vmatprep.subr.mxu0 0.0
    %193 = vmatpush1.msra.mxu0 0.0
    %194 = vmatprep.subr.mxu0 0.0
    %195 = vmatpush1.msra.mxu0 0.0
    %196 = vmatprep.subr.mxu0 0.0
    %197 = vmatpush1.msra.mxu0 0.0
    %198 = vmatprep.subr.mxu0 0.0
    %199 = vmatpush1.msra.mxu0 0.0
    %200 = vmatprep.subr.mxu0 0.0
    %201 = vmatpush1.msra.mxu0 0.0
    %202 = vmatprep.subr.mxu0 0.0
    %203 = vmatpush1.msra.mxu0 0.0
    %204 = vmatprep.subr.mxu0 0.0
    %205 = vmatpush1.msra.mxu0 0.0
    %206 = vmatprep.subr.mxu0 0.0
    %207 = vmatpush1.msra.mxu0 0.0
    %208 = vmatprep.subr.mxu0 0.0
    %209 = vmatpush1.msra.mxu0 0.0
    %210 = vmatprep.subr.mxu0 0.0
    %211 = vmatpush1.msra.mxu0 0.0
    %212 = vmatprep.subr.mxu0 0.0
    %213 = vmatpush1.msra.mxu0 0.0
    %214 = vmatprep.subr.mxu0 0.0
    %215 = vmatpush1.msra.mxu0 0.0
    %216 = vmatprep.subr.mxu0 0.0
    %217 = vmatpush1.msra.mxu0 0.0
    %218 = vmatprep.subr.mxu0 0.0
    %219 = vmatpush1.msra.mxu0 0.0
    %220 = vmatprep.subr.mxu0 0.0
    %221 = vmatpush1.msra.mxu0 0.0
    %222 = vmatprep.subr.mxu0 0.0
    %223 = vmatpush1.msra.mxu0 0.0
    %224 = vmatprep.subr.mxu0 0.0
    %225 = vmatpush1.msra.mxu0 0.0
    %226 = vmatprep.subr.mxu0 0.0
    %227 = vmatpush1.msra.mxu0 0.0
    %228 = vmatprep.subr.mxu0 0.0
    %229 = vmatpush1.msra.mxu0 0.0
    %230 = vmatprep.subr.mxu0 0.0
    %231 = vmatpush1.msra.mxu0 0.0
    %232 = vmatprep.subr.mxu0 0.0
    %233 = vmatpush1.msra.mxu0 0.0
    %234 = vmatprep.subr.mxu0 0.0
    %235 = vmatpush1.msra.mxu0 0.0
    %236 = vmatprep.subr.mxu0 0.0
    %237 = vmatpush1.msra.mxu0 0.0
    %238 = vmatprep.subr.mxu0 0.0
    %239 = vmatpush1.msra.mxu0 0.0
    %240 = vmatprep.subr.mxu0 0.0
    %241 = vmatpush1.msra.mxu0 0.0
    %242 = vmatprep.subr.mxu0 0.0
    %243 = vmatpush1.msra.mxu0 0.0
    %244 = vmatprep.subr.mxu0 0.0
    %245 = vmatpush1.msra.mxu0 0.0
    %246 = vmatprep.mubr.f32.mxu0 0.0
    %247 = vmatmul.mubr.f32.gmra.mrb[0].mxu0 %v180
    %v248 = vpop.f32.mrb[0].mxu0
    %v249 = vadd.f32 0.0, %v248
    %v250 = vpop.f32.mrb[0].mxu0
    %251 = vdwg.mxu0
    %v252 = vadd.f32 %v178, %v249
    %v254 = vlaneseq
    %v255 = vshrl.u32 %v254, 7
    %v256 = vsub.s32 0, %v255
    %v257 = vrot.slane %v252, %v256
    %v259 = vld [vmem:[%s0] sm:$0xff]
    %v260 = vld [vmem:[%s0 + $0x8] sm:$0xff]
    %v262 = vlaneseq
    %v263 = vshrl.u32 %v262, 7
    %v264 = vsub.s32 0, %v263
    %v265 = vrot.slane %v61, %v264
    %v268 = vsel %vm72, %v259, 0
    %v271 = vsel %vm72, %v260, 0
    %v274 = vsel %vm85, %v56, 0
    %276 = vmatprep.subr.mxu0 0.0
    %277 = vmatpush1.msra.mxu0 %v274
    %278 = vmatprep.subr.mxu0 0.0
    %279 = vmatpush1.msra.mxu0 0.0
    %280 = vmatprep.subr.mxu0 0.0
    %281 = vmatpush1.msra.mxu0 0.0
    %282 = vmatprep.subr.mxu0 0.0
    %283 = vmatpush1.msra.mxu0 0.0
    %284 = vmatprep.subr.mxu0 0.0
    %285 = vmatpush1.msra.mxu0 0.0
    %286 = vmatprep.subr.mxu0 0.0
    %287 = vmatpush1.msra.mxu0 0.0
    %288 = vmatprep.subr.mxu0 0.0
    %289 = vmatpush1.msra.mxu0 0.0
    %290 = vmatprep.subr.mxu0 0.0
    %291 = vmatpush1.msra.mxu0 0.0
    %292 = vmatprep.subr.mxu0 0.0
    %293 = vmatpush1.msra.mxu0 0.0
    %294 = vmatprep.subr.mxu0 0.0
    %295 = vmatpush1.msra.mxu0 0.0
    %296 = vmatprep.subr.mxu0 0.0
    %297 = vmatpush1.msra.mxu0 0.0
    %298 = vmatprep.subr.mxu0 0.0
    %299 = vmatpush1.msra.mxu0 0.0
    %300 = vmatprep.subr.mxu0 0.0
    %301 = vmatpush1.msra.mxu0 0.0
    %302 = vmatprep.subr.mxu0 0.0
    %303 = vmatpush1.msra.mxu0 0.0
    %304 = vmatprep.subr.mxu0 0.0
    %305 = vmatpush1.msra.mxu0 0.0
    %306 = vmatprep.subr.mxu0 0.0
    %307 = vmatpush1.msra.mxu0 0.0
    %308 = vmatprep.subr.mxu0 0.0
    %309 = vmatpush1.msra.mxu0 0.0
    %310 = vmatprep.subr.mxu0 0.0
    %311 = vmatpush1.msra.mxu0 0.0
    %312 = vmatprep.subr.mxu0 0.0
    %313 = vmatpush1.msra.mxu0 0.0
    %314 = vmatprep.subr.mxu0 0.0
    %315 = vmatpush1.msra.mxu0 0.0
    %316 = vmatprep.subr.mxu0 0.0
    %317 = vmatpush1.msra.mxu0 0.0
    %318 = vmatprep.subr.mxu0 0.0
    %319 = vmatpush1.msra.mxu0 0.0
    %320 = vmatprep.subr.mxu0 0.0
    %321 = vmatpush1.msra.mxu0 0.0
    %322 = vmatprep.subr.mxu0 0.0
    %323 = vmatpush1.msra.mxu0 0.0
    %324 = vmatprep.subr.mxu0 0.0
    %325 = vmatpush1.msra.mxu0 0.0
    %326 = vmatprep.subr.mxu0 0.0
    %327 = vmatpush1.msra.mxu0 0.0
    %328 = vmatprep.subr.mxu0 0.0
    %329 = vmatpush1.msra.mxu0 0.0
    %330 = vmatprep.subr.mxu0 0.0
    %331 = vmatpush1.msra.mxu0 0.0
    %332 = vmatprep.subr.mxu0 0.0
    %333 = vmatpush1.msra.mxu0 0.0
    %334 = vmatprep.subr.mxu0 0.0
    %335 = vmatpush1.msra.mxu0 0.0
    %336 = vmatprep.subr.mxu0 0.0
    %337 = vmatpush1.msra.mxu0 0.0
    %338 = vmatprep.subr.mxu0 0.0
    %339 = vmatpush1.msra.mxu0 0.0
    %340 = vmatprep.mubr.f32.mxu0 0.0
    %341 = vmatmul.mubr.f32.gmra.mrb[0].mxu0 %v268
    %v342 = vpop.f32.mrb[0].mxu0
    %v343 = vadd.f32 %v265, %v342
    %v344 = vpop.f32.mrb[0].mxu0
    %345 = vmatprep.mubr.f32.mxu0 0.0
    %346 = vmatmul.mubr.f32.gmra.mrb[0].mxu0 %v271
    %v347 = vpop.f32.mrb[0].mxu0
    %v348 = vadd.f32 %v265, %v347
    %v349 = vpop.f32.mrb[0].mxu0
    %350 = vdwg.mxu0
    %vm351 = vcmask 261120
    %v353 = vsel %vm351, 0.0, 0
    %355 = vmatprep.subr.mxu0 0.0
    %356 = vmatpush1.msra.mxu0 %v57
    %357 = vmatprep.subr.mxu0 0.0
    %358 = vmatpush1.msra.mxu0 %v58
    %359 = vmatprep.subr.mxu0 0.0
    %360 = vmatpush1.msra.mxu0 %v59
    %361 = vmatprep.subr.mxu0 0.0
    %362 = vmatpush1.msra.mxu0 %v60
    %363 = vmatprep.subr.mxu0 0.0
    %364 = vmatpush1.msra.mxu0 0.0
    %365 = vmatprep.subr.mxu0 0.0
    %366 = vmatpush1.msra.mxu0 0.0
    %367 = vmatprep.subr.mxu0 0.0
    %368 = vmatpush1.msra.mxu0 0.0
    %369 = vmatprep.subr.mxu0 0.0
    %370 = vmatpush1.msra.mxu0 0.0
    %371 = vmatprep.subr.mxu0 0.0
    %372 = vmatpush1.msra.mxu0 0.0
    %373 = vmatprep.subr.mxu0 0.0
    %374 = vmatpush1.msra.mxu0 0.0
    %375 = vmatprep.subr.mxu0 0.0
    %376 = vmatpush1.msra.mxu0 0.0
    %377 = vmatprep.subr.mxu0 0.0
    %378 = vmatpush1.msra.mxu0 0.0
    %379 = vmatprep.subr.mxu0 0.0
    %380 = vmatpush1.msra.mxu0 0.0
    %381 = vmatprep.subr.mxu0 0.0
    %382 = vmatpush1.msra.mxu0 0.0
    %383 = vmatprep.subr.mxu0 0.0
    %384 = vmatpush1.msra.mxu0 0.0
    %385 = vmatprep.subr.mxu0 0.0
    %386 = vmatpush1.msra.mxu0 0.0
    %387 = vmatprep.subr.mxu0 0.0
    %388 = vmatpush1.msra.mxu0 0.0
    %389 = vmatprep.subr.mxu0 0.0
    %390 = vmatpush1.msra.mxu0 0.0
    %391 = vmatprep.subr.mxu0 0.0
    %392 = vmatpush1.msra.mxu0 0.0
    %393 = vmatprep.subr.mxu0 0.0
    %394 = vmatpush1.msra.mxu0 0.0
    %395 = vmatprep.subr.mxu0 0.0
    %396 = vmatpush1.msra.mxu0 0.0
    %397 = vmatprep.subr.mxu0 0.0
    %398 = vmatpush1.msra.mxu0 0.0
    %399 = vmatprep.subr.mxu0 0.0
    %400 = vmatpush1.msra.mxu0 0.0
    %401 = vmatprep.subr.mxu0 0.0
    %402 = vmatpush1.msra.mxu0 0.0
    %403 = vmatprep.subr.mxu0 0.0
    %404 = vmatpush1.msra.mxu0 0.0
    %405 = vmatprep.subr.mxu0 0.0
    %406 = vmatpush1.msra.mxu0 0.0
    %407 = vmatprep.subr.mxu0 0.0
    %408 = vmatpush1.msra.mxu0 0.0
    %409 = vmatprep.subr.mxu0 0.0
    %410 = vmatpush1.msra.mxu0 0.0
    %411 = vmatprep.subr.mxu0 0.0
    %412 = vmatpush1.msra.mxu0 0.0
    %413 = vmatprep.subr.mxu0 0.0
    %414 = vmatpush1.msra.mxu0 0.0
    %415 = vmatprep.subr.mxu0 0.0
    %416 = vmatpush1.msra.mxu0 0.0
    %417 = vmatprep.subr.mxu0 0.0
    %418 = vmatpush1.msra.mxu0 0.0
    %419 = vmatprep.mubr.f32.mxu0 0.0
    %420 = vmatmul.mubr.f32.gmra.mrb[0].mxu0 %v353
    %v421 = vpop.f32.mrb[0].mxu0
    %v422 = vadd.f32 0.0, %v421
    %v423 = vpop.f32.mrb[0].mxu0
    %424 = vdwg.mxu0
    %v425 = vadd.f32 %v343, %v422
    %v426 = vxor.u32 %v425, 2147483648
    %v427 = vmul.f32 %v426, 1.442695
    %v428 = vpow.pop %v427
    %v429 = vadd.f32 %v428, 1.0
    %v430 = vrcp.pop %v429
    %v431 = vmul.f32 1.0, %v430
    %v432 = vtanh.pop %v425
    %v433 = vmul.f32 %v431, 0.0
    %435 = vrot.lane.b32.xlu0 %v432, 64
    %v436 = vpop.permute.xlu0 %435
    %v438 = vmul.f32 %v431, %v436
    %440 = vrot.lane.b32.xlu0 %v438, 32
    %v441 = vpop.permute.xlu0 %440
    %v443 = vadd.f32 %v433, %v441
    %v444 = vtanh.pop %v443
    %446 = vrot.lane.b32.xlu0 %v444, 64
    %v447 = vpop.permute.xlu0 %446
    %v449 = vmul.f32 %v431, %v447
    %451 = vrot.lane.b32.xlu0 %v449, 32
    %v452 = vpop.permute.xlu0 %451
    %v453 = vsel %vm351, %v452, 0
    %455 = vmatprep.subr.mxu0 0.0
    %456 = vmatpush1.msra.mxu0 %v57
    %457 = vmatprep.subr.mxu0 0.0
    %458 = vmatpush1.msra.mxu0 %v58
    %459 = vmatprep.subr.mxu0 0.0
    %460 = vmatpush1.msra.mxu0 %v59
    %461 = vmatprep.subr.mxu0 0.0
    %462 = vmatpush1.msra.mxu0 %v60
    %463 = vmatprep.subr.mxu0 0.0
    %464 = vmatpush1.msra.mxu0 0.0
    %465 = vmatprep.subr.mxu0 0.0
    %466 = vmatpush1.msra.mxu0 0.0
    %467 = vmatprep.subr.mxu0 0.0
    %468 = vmatpush1.msra.mxu0 0.0
    %469 = vmatprep.subr.mxu0 0.0
    %470 = vmatpush1.msra.mxu0 0.0
    %471 = vmatprep.subr.mxu0 0.0
    %472 = vmatpush1.msra.mxu0 0.0
    %473 = vmatprep.subr.mxu0 0.0
    %474 = vmatpush1.msra.mxu0 0.0
    %475 = vmatprep.subr.mxu0 0.0
    %476 = vmatpush1.msra.mxu0 0.0
    %477 = vmatprep.subr.mxu0 0.0
    %478 = vmatpush1.msra.mxu0 0.0
    %479 = vmatprep.subr.mxu0 0.0
    %480 = vmatpush1.msra.mxu0 0.0
    %481 = vmatprep.subr.mxu0 0.0
    %482 = vmatpush1.msra.mxu0 0.0
    %483 = vmatprep.subr.mxu0 0.0
    %484 = vmatpush1.msra.mxu0 0.0
    %485 = vmatprep.subr.mxu0 0.0
    %486 = vmatpush1.msra.mxu0 0.0
    %487 = vmatprep.subr.mxu0 0.0
    %488 = vmatpush1.msra.mxu0 0.0
    %489 = vmatprep.subr.mxu0 0.0
    %490 = vmatpush1.msra.mxu0 0.0
    %491 = vmatprep.subr.mxu0 0.0
    %492 = vmatpush1.msra.mxu0 0.0
    %493 = vmatprep.subr.mxu0 0.0
    %494 = vmatpush1.msra.mxu0 0.0
    %495 = vmatprep.subr.mxu0 0.0
    %496 = vmatpush1.msra.mxu0 0.0
    %497 = vmatprep.subr.mxu0 0.0
    %498 = vmatpush1.msra.mxu0 0.0
    %499 = vmatprep.subr.mxu0 0.0
    %500 = vmatpush1.msra.mxu0 0.0
    %501 = vmatprep.subr.mxu0 0.0
    %502 = vmatpush1.msra.mxu0 0.0
    %503 = vmatprep.subr.mxu0 0.0
    %504 = vmatpush1.msra.mxu0 0.0
    %505 = vmatprep.subr.mxu0 0.0
    %506 = vmatpush1.msra.mxu0 0.0
    %507 = vmatprep.subr.mxu0 0.0
    %508 = vmatpush1.msra.mxu0 0.0
    %509 = vmatprep.subr.mxu0 0.0
    %510 = vmatpush1.msra.mxu0 0.0
    %511 = vmatprep.subr.mxu0 0.0
    %512 = vmatpush1.msra.mxu0 0.0
    %513 = vmatprep.subr.mxu0 0.0
    %514 = vmatpush1.msra.mxu0 0.0
    %515 = vmatprep.subr.mxu0 0.0
    %516 = vmatpush1.msra.mxu0 0.0
    %517 = vmatprep.subr.mxu0 0.0
    %518 = vmatpush1.msra.mxu0 0.0
    %519 = vmatprep.mubr.f32.mxu0 0.0
    %520 = vmatmul.mubr.f32.gmra.mrb[0].mxu0 %v453
    %v521 = vpop.f32.mrb[0].mxu0
    %v522 = vadd.f32 0.0, %v521
    %v523 = vpop.f32.mrb[0].mxu0
    %524 = vdwg.mxu0
    %v526 = vrot.slane %v522, 6
    %v528 = vadd.f32 %v343, %v526
    %v529 = vxor.u32 %v528, 2147483648
    %v530 = vmul.f32 %v529, 1.442695
    %v531 = vpow.pop %v530
    %v532 = vadd.f32 %v531, 1.0
    %v533 = vrcp.pop %v532
    %v534 = vmul.f32 1.0, %v533
    %v535 = vtanh.pop %v528
    %v537 = vrot.slane %v443, 6
    %v539 = vmul.f32 %v534, %v537
    %541 = vrot.lane.b32.xlu0 %v535, 64
    %v542 = vpop.permute.xlu0 %541
    %v544 = vmul.f32 %v534, %v542
    %546 = vrot.lane.b32.xlu0 %v544, 32
    %v547 = vpop.permute.xlu0 %546
    %v549 = vadd.f32 %v539, %v547
    %v550 = vtanh.pop %v549
    %552 = vrot.lane.b32.xlu0 %v550, 64
    %v553 = vpop.permute.xlu0 %552
    %v555 = vmul.f32 %v534, %v553
    %v557 = vrot.slane %v555, 2
    %558 = vrot.lane.b32.xlu0 %v557, 32
    %v559 = vpop.permute.xlu0 %558
    %v560 = vsel %vm351, %v559, 0
    %562 = vmatprep.subr.mxu0 0.0
    %563 = vmatpush1.msra.mxu0 %v57
    %564 = vmatprep.subr.mxu0 0.0
    %565 = vmatpush1.msra.mxu0 %v58
    %566 = vmatprep.subr.mxu0 0.0
    %567 = vmatpush1.msra.mxu0 %v59
    %568 = vmatprep.subr.mxu0 0.0
    %569 = vmatpush1.msra.mxu0 %v60
    %570 = vmatprep.subr.mxu0 0.0
    %571 = vmatpush1.msra.mxu0 0.0
    %572 = vmatprep.subr.mxu0 0.0
    %573 = vmatpush1.msra.mxu0 0.0
    %574 = vmatprep.subr.mxu0 0.0
    %575 = vmatpush1.msra.mxu0 0.0
    %576 = vmatprep.subr.mxu0 0.0
    %577 = vmatpush1.msra.mxu0 0.0
    %578 = vmatprep.subr.mxu0 0.0
    %579 = vmatpush1.msra.mxu0 0.0
    %580 = vmatprep.subr.mxu0 0.0
    %581 = vmatpush1.msra.mxu0 0.0
    %582 = vmatprep.subr.mxu0 0.0
    %583 = vmatpush1.msra.mxu0 0.0
    %584 = vmatprep.subr.mxu0 0.0
    %585 = vmatpush1.msra.mxu0 0.0
    %586 = vmatprep.subr.mxu0 0.0
    %587 = vmatpush1.msra.mxu0 0.0
    %588 = vmatprep.subr.mxu0 0.0
    %589 = vmatpush1.msra.mxu0 0.0
    %590 = vmatprep.subr.mxu0 0.0
    %591 = vmatpush1.msra.mxu0 0.0
    %592 = vmatprep.subr.mxu0 0.0
    %593 = vmatpush1.msra.mxu0 0.0
    %594 = vmatprep.subr.mxu0 0.0
    %595 = vmatpush1.msra.mxu0 0.0
    %596 = vmatprep.subr.mxu0 0.0
    %597 = vmatpush1.msra.mxu0 0.0
    %598 = vmatprep.subr.mxu0 0.0
    %599 = vmatpush1.msra.mxu0 0.0
    %600 = vmatprep.subr.mxu0 0.0
    %601 = vmatpush1.msra.mxu0 0.0
    %602 = vmatprep.subr.mxu0 0.0
    %603 = vmatpush1.msra.mxu0 0.0
    %604 = vmatprep.subr.mxu0 0.0
    %605 = vmatpush1.msra.mxu0 0.0
    %606 = vmatprep.subr.mxu0 0.0
    %607 = vmatpush1.msra.mxu0 0.0
    %608 = vmatprep.subr.mxu0 0.0
    %609 = vmatpush1.msra.mxu0 0.0
    %610 = vmatprep.subr.mxu0 0.0
    %611 = vmatpush1.msra.mxu0 0.0
    %612 = vmatprep.subr.mxu0 0.0
    %613 = vmatpush1.msra.mxu0 0.0
    %614 = vmatprep.subr.mxu0 0.0
    %615 = vmatpush1.msra.mxu0 0.0
    %616 = vmatprep.subr.mxu0 0.0
    %617 = vmatpush1.msra.mxu0 0.0
    %618 = vmatprep.subr.mxu0 0.0
    %619 = vmatpush1.msra.mxu0 0.0
    %620 = vmatprep.subr.mxu0 0.0
    %621 = vmatpush1.msra.mxu0 0.0
    %622 = vmatprep.subr.mxu0 0.0
    %623 = vmatpush1.msra.mxu0 0.0
    %624 = vmatprep.subr.mxu0 0.0
    %625 = vmatpush1.msra.mxu0 0.0
    %626 = vmatprep.mubr.f32.mxu0 0.0
    %627 = vmatmul.mubr.f32.gmra.mrb[0].mxu0 %v560
    %v628 = vpop.f32.mrb[0].mxu0
    %v629 = vadd.f32 0.0, %v628
    %v630 = vpop.f32.mrb[0].mxu0
    %631 = vdwg.mxu0
    %v633 = vrot.slane %v629, 4
    %v635 = vadd.f32 %v343, %v633
    %v636 = vxor.u32 %v635, 2147483648
    %v637 = vmul.f32 %v636, 1.442695
    %v638 = vpow.pop %v637
    %v639 = vadd.f32 %v638, 1.0
    %v640 = vrcp.pop %v639
    %v641 = vmul.f32 1.0, %v640
    %v642 = vtanh.pop %v635
    %v644 = vrot.slane %v549, 6
    %v646 = vmul.f32 %v641, %v644
    %648 = vrot.lane.b32.xlu0 %v642, 64
    %v649 = vpop.permute.xlu0 %648
    %v651 = vmul.f32 %v641, %v649
    %653 = vrot.lane.b32.xlu0 %v651, 32
    %v654 = vpop.permute.xlu0 %653
    %v656 = vadd.f32 %v646, %v654
    %v657 = vtanh.pop %v656
    %659 = vrot.lane.b32.xlu0 %v657, 64
    %v660 = vpop.permute.xlu0 %659
    %v662 = vmul.f32 %v641, %v660
    %v664 = vrot.slane %v662, 4
    %665 = vrot.lane.b32.xlu0 %v664, 32
    %v666 = vpop.permute.xlu0 %665
    %v667 = vsel %vm351, %v666, 0
    %669 = vmatprep.subr.mxu0 0.0
    %670 = vmatpush1.msra.mxu0 %v57
    %671 = vmatprep.subr.mxu0 0.0
    %672 = vmatpush1.msra.mxu0 %v58
    %673 = vmatprep.subr.mxu0 0.0
    %674 = vmatpush1.msra.mxu0 %v59
    %675 = vmatprep.subr.mxu0 0.0
    %676 = vmatpush1.msra.mxu0 %v60
    %677 = vmatprep.subr.mxu0 0.0
    %678 = vmatpush1.msra.mxu0 0.0
    %679 = vmatprep.subr.mxu0 0.0
    %680 = vmatpush1.msra.mxu0 0.0
    %681 = vmatprep.subr.mxu0 0.0
    %682 = vmatpush1.msra.mxu0 0.0
    %683 = vmatprep.subr.mxu0 0.0
    %684 = vmatpush1.msra.mxu0 0.0
    %685 = vmatprep.subr.mxu0 0.0
    %686 = vmatpush1.msra.mxu0 0.0
    %687 = vmatprep.subr.mxu0 0.0
    %688 = vmatpush1.msra.mxu0 0.0
    %689 = vmatprep.subr.mxu0 0.0
    %690 = vmatpush1.msra.mxu0 0.0
    %691 = vmatprep.subr.mxu0 0.0
    %692 = vmatpush1.msra.mxu0 0.0
    %693 = vmatprep.subr.mxu0 0.0
    %694 = vmatpush1.msra.mxu0 0.0
    %695 = vmatprep.subr.mxu0 0.0
    %696 = vmatpush1.msra.mxu0 0.0
    %697 = vmatprep.subr.mxu0 0.0
    %698 = vmatpush1.msra.mxu0 0.0
    %699 = vmatprep.subr.mxu0 0.0
    %700 = vmatpush1.msra.mxu0 0.0
    %701 = vmatprep.subr.mxu0 0.0
    %702 = vmatpush1.msra.mxu0 0.0
    %703 = vmatprep.subr.mxu0 0.0
    %704 = vmatpush1.msra.mxu0 0.0
    %705 = vmatprep.subr.mxu0 0.0
    %706 = vmatpush1.msra.mxu0 0.0
    %707 = vmatprep.subr.mxu0 0.0
    %708 = vmatpush1.msra.mxu0 0.0
    %709 = vmatprep.subr.mxu0 0.0
    %710 = vmatpush1.msra.mxu0 0.0
    %711 = vmatprep.subr.mxu0 0.0
    %712 = vmatpush1.msra.mxu0 0.0
    %713 = vmatprep.subr.mxu0 0.0
    %714 = vmatpush1.msra.mxu0 0.0
    %715 = vmatprep.subr.mxu0 0.0
    %716 = vmatpush1.msra.mxu0 0.0
    %717 = vmatprep.subr.mxu0 0.0
    %718 = vmatpush1.msra.mxu0 0.0
    %719 = vmatprep.subr.mxu0 0.0
    %720 = vmatpush1.msra.mxu0 0.0
    %721 = vmatprep.subr.mxu0 0.0
    %722 = vmatpush1.msra.mxu0 0.0
    %723 = vmatprep.subr.mxu0 0.0
    %724 = vmatpush1.msra.mxu0 0.0
    %725 = vmatprep.subr.mxu0 0.0
    %726 = vmatpush1.msra.mxu0 0.0
    %727 = vmatprep.subr.mxu0 0.0
    %728 = vmatpush1.msra.mxu0 0.0
    %729 = vmatprep.subr.mxu0 0.0
    %730 = vmatpush1.msra.mxu0 0.0
    %731 = vmatprep.subr.mxu0 0.0
    %732 = vmatpush1.msra.mxu0 0.0
    %733 = vmatprep.mubr.f32.mxu0 0.0
    %734 = vmatmul.mubr.f32.gmra.mrb[0].mxu0 %v667
    %v735 = vpop.f32.mrb[0].mxu0
    %v736 = vadd.f32 0.0, %v735
    %v737 = vpop.f32.mrb[0].mxu0
    %738 = vdwg.mxu0
    %v740 = vrot.slane %v736, 2
    %v742 = vadd.f32 %v343, %v740
    %v743 = vxor.u32 %v742, 2147483648
    %v744 = vmul.f32 %v743, 1.442695
    %v745 = vpow.pop %v744
    %v746 = vadd.f32 %v745, 1.0
    %v747 = vrcp.pop %v746
    %v748 = vmul.f32 1.0, %v747
    %v749 = vtanh.pop %v742
    %v751 = vrot.slane %v656, 6
    %v753 = vmul.f32 %v748, %v751
    %755 = vrot.lane.b32.xlu0 %v749, 64
    %v756 = vpop.permute.xlu0 %755
    %v758 = vmul.f32 %v748, %v756
    %760 = vrot.lane.b32.xlu0 %v758, 32
    %v761 = vpop.permute.xlu0 %760
    %v763 = vadd.f32 %v753, %v761
    %v764 = vtanh.pop %v763
    %766 = vrot.lane.b32.xlu0 %v764, 64
    %v767 = vpop.permute.xlu0 %766
    %v769 = vmul.f32 %v748, %v767
    %v771 = vrot.slane %v769, 6
    %772 = vrot.lane.b32.xlu0 %v771, 32
    %v773 = vpop.permute.xlu0 %772
    %v774 = vsel %vm351, %v773, 0
    %776 = vmatprep.subr.mxu0 0.0
    %777 = vmatpush1.msra.mxu0 %v57
    %778 = vmatprep.subr.mxu0 0.0
    %779 = vmatpush1.msra.mxu0 %v58
    %780 = vmatprep.subr.mxu0 0.0
    %781 = vmatpush1.msra.mxu0 %v59
    %782 = vmatprep.subr.mxu0 0.0
    %783 = vmatpush1.msra.mxu0 %v60
    %784 = vmatprep.subr.mxu0 0.0
    %785 = vmatpush1.msra.mxu0 0.0
    %786 = vmatprep.subr.mxu0 0.0
    %787 = vmatpush1.msra.mxu0 0.0
    %788 = vmatprep.subr.mxu0 0.0
    %789 = vmatpush1.msra.mxu0 0.0
    %790 = vmatprep.subr.mxu0 0.0
    %791 = vmatpush1.msra.mxu0 0.0
    %792 = vmatprep.subr.mxu0 0.0
    %793 = vmatpush1.msra.mxu0 0.0
    %794 = vmatprep.subr.mxu0 0.0
    %795 = vmatpush1.msra.mxu0 0.0
    %796 = vmatprep.subr.mxu0 0.0
    %797 = vmatpush1.msra.mxu0 0.0
    %798 = vmatprep.subr.mxu0 0.0
    %799 = vmatpush1.msra.mxu0 0.0
    %800 = vmatprep.subr.mxu0 0.0
    %801 = vmatpush1.msra.mxu0 0.0
    %802 = vmatprep.subr.mxu0 0.0
    %803 = vmatpush1.msra.mxu0 0.0
    %804 = vmatprep.subr.mxu0 0.0
    %805 = vmatpush1.msra.mxu0 0.0
    %806 = vmatprep.subr.mxu0 0.0
    %807 = vmatpush1.msra.mxu0 0.0
    %808 = vmatprep.subr.mxu0 0.0
    %809 = vmatpush1.msra.mxu0 0.0
    %810 = vmatprep.subr.mxu0 0.0
    %811 = vmatpush1.msra.mxu0 0.0
    %812 = vmatprep.subr.mxu0 0.0
    %813 = vmatpush1.msra.mxu0 0.0
    %814 = vmatprep.subr.mxu0 0.0
    %815 = vmatpush1.msra.mxu0 0.0
    %816 = vmatprep.subr.mxu0 0.0
    %817 = vmatpush1.msra.mxu0 0.0
    %818 = vmatprep.subr.mxu0 0.0
    %819 = vmatpush1.msra.mxu0 0.0
    %820 = vmatprep.subr.mxu0 0.0
    %821 = vmatpush1.msra.mxu0 0.0
    %822 = vmatprep.subr.mxu0 0.0
    %823 = vmatpush1.msra.mxu0 0.0
    %824 = vmatprep.subr.mxu0 0.0
    %825 = vmatpush1.msra.mxu0 0.0
    %826 = vmatprep.subr.mxu0 0.0
    %827 = vmatpush1.msra.mxu0 0.0
    %828 = vmatprep.subr.mxu0 0.0
    %829 = vmatpush1.msra.mxu0 0.0
    %830 = vmatprep.subr.mxu0 0.0
    %831 = vmatpush1.msra.mxu0 0.0
    %832 = vmatprep.subr.mxu0 0.0
    %833 = vmatpush1.msra.mxu0 0.0
    %834 = vmatprep.subr.mxu0 0.0
    %835 = vmatpush1.msra.mxu0 0.0
    %836 = vmatprep.subr.mxu0 0.0
    %837 = vmatpush1.msra.mxu0 0.0
    %838 = vmatprep.subr.mxu0 0.0
    %839 = vmatpush1.msra.mxu0 0.0
    %840 = vmatprep.mubr.f32.mxu0 0.0
    %841 = vmatmul.mubr.f32.gmra.mrb[0].mxu0 %v774
    %v842 = vpop.f32.mrb[0].mxu0
    %v843 = vadd.f32 0.0, %v842
    %v844 = vpop.f32.mrb[0].mxu0
    %845 = vdwg.mxu0
    %v846 = vadd.f32 %v348, %v843
    %v847 = vxor.u32 %v846, 2147483648
    %v848 = vmul.f32 %v847, 1.442695
    %v849 = vpow.pop %v848
    %v850 = vadd.f32 %v849, 1.0
    %v851 = vrcp.pop %v850
    %v852 = vmul.f32 1.0, %v851
    %v853 = vtanh.pop %v846
    %v855 = vrot.slane %v763, 6
    %v857 = vmul.f32 %v852, %v855
    %859 = vrot.lane.b32.xlu0 %v853, 64
    %v860 = vpop.permute.xlu0 %859
    %v862 = vmul.f32 %v852, %v860
    %864 = vrot.lane.b32.xlu0 %v862, 32
    %v865 = vpop.permute.xlu0 %864
    %v867 = vadd.f32 %v857, %v865
    %v868 = vtanh.pop %v867
    %870 = vrot.lane.b32.xlu0 %v868, 64
    %v871 = vpop.permute.xlu0 %870
    %v873 = vmul.f32 %v852, %v871
    %875 = vrot.lane.b32.xlu0 %v873, 32
    %v876 = vpop.permute.xlu0 %875
    %v877 = vsel %vm351, %v876, 0
    %879 = vmatprep.subr.mxu0 0.0
    %880 = vmatpush1.msra.mxu0 %v57
    %881 = vmatprep.subr.mxu0 0.0
    %882 = vmatpush1.msra.mxu0 %v58
    %883 = vmatprep.subr.mxu0 0.0
    %884 = vmatpush1.msra.mxu0 %v59
    %885 = vmatprep.subr.mxu0 0.0
    %886 = vmatpush1.msra.mxu0 %v60
    %887 = vmatprep.subr.mxu0 0.0
    %888 = vmatpush1.msra.mxu0 0.0
    %889 = vmatprep.subr.mxu0 0.0
    %890 = vmatpush1.msra.mxu0 0.0
    %891 = vmatprep.subr.mxu0 0.0
    %892 = vmatpush1.msra.mxu0 0.0
    %893 = vmatprep.subr.mxu0 0.0
    %894 = vmatpush1.msra.mxu0 0.0
    %895 = vmatprep.subr.mxu0 0.0
    %896 = vmatpush1.msra.mxu0 0.0
    %897 = vmatprep.subr.mxu0 0.0
    %898 = vmatpush1.msra.mxu0 0.0
    %899 = vmatprep.subr.mxu0 0.0
    %900 = vmatpush1.msra.mxu0 0.0
    %901 = vmatprep.subr.mxu0 0.0
    %902 = vmatpush1.msra.mxu0 0.0
    %903 = vmatprep.subr.mxu0 0.0
    %904 = vmatpush1.msra.mxu0 0.0
    %905 = vmatprep.subr.mxu0 0.0
    %906 = vmatpush1.msra.mxu0 0.0
    %907 = vmatprep.subr.mxu0 0.0
    %908 = vmatpush1.msra.mxu0 0.0
    %909 = vmatprep.subr.mxu0 0.0
    %910 = vmatpush1.msra.mxu0 0.0
    %911 = vmatprep.subr.mxu0 0.0
    %912 = vmatpush1.msra.mxu0 0.0
    %913 = vmatprep.subr.mxu0 0.0
    %914 = vmatpush1.msra.mxu0 0.0
    %915 = vmatprep.subr.mxu0 0.0
    %916 = vmatpush1.msra.mxu0 0.0
    %917 = vmatprep.subr.mxu0 0.0
    %918 = vmatpush1.msra.mxu0 0.0
    %919 = vmatprep.subr.mxu0 0.0
    %920 = vmatpush1.msra.mxu0 0.0
    %921 = vmatprep.subr.mxu0 0.0
    %922 = vmatpush1.msra.mxu0 0.0
    %923 = vmatprep.subr.mxu0 0.0
    %924 = vmatpush1.msra.mxu0 0.0
    %925 = vmatprep.subr.mxu0 0.0
    %926 = vmatpush1.msra.mxu0 0.0
    %927 = vmatprep.subr.mxu0 0.0
    %928 = vmatpush1.msra.mxu0 0.0
    %929 = vmatprep.subr.mxu0 0.0
    %930 = vmatpush1.msra.mxu0 0.0
    %931 = vmatprep.subr.mxu0 0.0
    %932 = vmatpush1.msra.mxu0 0.0
    %933 = vmatprep.subr.mxu0 0.0
    %934 = vmatpush1.msra.mxu0 0.0
    %935 = vmatprep.subr.mxu0 0.0
    %936 = vmatpush1.msra.mxu0 0.0
    %937 = vmatprep.subr.mxu0 0.0
    %938 = vmatpush1.msra.mxu0 0.0
    %939 = vmatprep.subr.mxu0 0.0
    %940 = vmatpush1.msra.mxu0 0.0
    %941 = vmatprep.subr.mxu0 0.0
    %942 = vmatpush1.msra.mxu0 0.0
    %943 = vmatprep.mubr.f32.mxu0 0.0
    %944 = vmatmul.mubr.f32.gmra.mrb[0].mxu0 %v877
    %v945 = vpop.f32.mrb[0].mxu0
    %v946 = vadd.f32 0.0, %v945
    %v947 = vpop.f32.mrb[0].mxu0
    %948 = vdwg.mxu0
    %v950 = vrot.slane %v946, 6
    %v952 = vadd.f32 %v348, %v950
    %v953 = vxor.u32 %v952, 2147483648
    %v954 = vmul.f32 %v953, 1.442695
    %v955 = vpow.pop %v954
    %v956 = vadd.f32 %v955, 1.0
    %v957 = vrcp.pop %v956
    %v958 = vmul.f32 1.0, %v957
    %v959 = vtanh.pop %v952
    %v961 = vrot.slane %v867, 6
    %v963 = vmul.f32 %v958, %v961
    %965 = vrot.lane.b32.xlu0 %v959, 64
    %v966 = vpop.permute.xlu0 %965
    %v968 = vmul.f32 %v958, %v966
    %970 = vrot.lane.b32.xlu0 %v968, 32
    %v971 = vpop.permute.xlu0 %970
    %v973 = vadd.f32 %v963, %v971
    %v974 = vtanh.pop %v973
    %976 = vrot.lane.b32.xlu0 %v974, 64
    %v977 = vpop.permute.xlu0 %976
    %v979 = vmul.f32 %v958, %v977
    %v981 = vrot.slane %v979, 2
    %982 = vrot.lane.b32.xlu0 %v981, 32
    %v983 = vpop.permute.xlu0 %982
    %v984 = vsel %vm351, %v983, 0
    %986 = vmatprep.subr.mxu0 0.0
    %987 = vmatpush1.msra.mxu0 %v57
    %988 = vmatprep.subr.mxu0 0.0
    %989 = vmatpush1.msra.mxu0 %v58
    %990 = vmatprep.subr.mxu0 0.0
    %991 = vmatpush1.msra.mxu0 %v59
    %992 = vmatprep.subr.mxu0 0.0
    %993 = vmatpush1.msra.mxu0 %v60
    %994 = vmatprep.subr.mxu0 0.0
    %995 = vmatpush1.msra.mxu0 0.0
    %996 = vmatprep.subr.mxu0 0.0
    %997 = vmatpush1.msra.mxu0 0.0
    %998 = vmatprep.subr.mxu0 0.0
    %999 = vmatpush1.msra.mxu0 0.0
    %1000 = vmatprep.subr.mxu0 0.0
    %1001 = vmatpush1.msra.mxu0 0.0
    %1002 = vmatprep.subr.mxu0 0.0
    %1003 = vmatpush1.msra.mxu0 0.0
    %1004 = vmatprep.subr.mxu0 0.0
    %1005 = vmatpush1.msra.mxu0 0.0
    %1006 = vmatprep.subr.mxu0 0.0
    %1007 = vmatpush1.msra.mxu0 0.0
    %1008 = vmatprep.subr.mxu0 0.0
    %1009 = vmatpush1.msra.mxu0 0.0
    %1010 = vmatprep.subr.mxu0 0.0
    %1011 = vmatpush1.msra.mxu0 0.0
    %1012 = vmatprep.subr.mxu0 0.0
    %1013 = vmatpush1.msra.mxu0 0.0
    %1014 = vmatprep.subr.mxu0 0.0
    %1015 = vmatpush1.msra.mxu0 0.0
    %1016 = vmatprep.subr.mxu0 0.0
    %1017 = vmatpush1.msra.mxu0 0.0
    %1018 = vmatprep.subr.mxu0 0.0
    %1019 = vmatpush1.msra.mxu0 0.0
    %1020 = vmatprep.subr.mxu0 0.0
    %1021 = vmatpush1.msra.mxu0 0.0
    %1022 = vmatprep.subr.mxu0 0.0
    %1023 = vmatpush1.msra.mxu0 0.0
    %1024 = vmatprep.subr.mxu0 0.0
    %1025 = vmatpush1.msra.mxu0 0.0
    %1026 = vmatprep.subr.mxu0 0.0
    %1027 = vmatpush1.msra.mxu0 0.0
    %1028 = vmatprep.subr.mxu0 0.0
    %1029 = vmatpush1.msra.mxu0 0.0
    %1030 = vmatprep.subr.mxu0 0.0
    %1031 = vmatpush1.msra.mxu0 0.0
    %1032 = vmatprep.subr.mxu0 0.0
    %1033 = vmatpush1.msra.mxu0 0.0
    %1034 = vmatprep.subr.mxu0 0.0
    %1035 = vmatpush1.msra.mxu0 0.0
    %1036 = vmatprep.subr.mxu0 0.0
    %1037 = vmatpush1.msra.mxu0 0.0
    %1038 = vmatprep.subr.mxu0 0.0
    %1039 = vmatpush1.msra.mxu0 0.0
    %1040 = vmatprep.subr.mxu0 0.0
    %1041 = vmatpush1.msra.mxu0 0.0
    %1042 = vmatprep.subr.mxu0 0.0
    %1043 = vmatpush1.msra.mxu0 0.0
    %1044 = vmatprep.subr.mxu0 0.0
    %1045 = vmatpush1.msra.mxu0 0.0
    %1046 = vmatprep.subr.mxu0 0.0
    %1047 = vmatpush1.msra.mxu0 0.0
    %1048 = vmatprep.subr.mxu0 0.0
    %1049 = vmatpush1.msra.mxu0 0.0
    %1050 = vmatprep.mubr.f32.mxu0 0.0
    %1051 = vmatmul.mubr.f32.gmra.mrb[0].mxu0 %v984
    %v1052 = vpop.f32.mrb[0].mxu0
    %v1053 = vadd.f32 0.0, %v1052
    %v1054 = vpop.f32.mrb[0].mxu0
    %1055 = vdwg.mxu0
    %v1057 = vrot.slane %v1053, 4
    %v1059 = vadd.f32 %v348, %v1057
    %v1060 = vxor.u32 %v1059, 2147483648
    %v1061 = vmul.f32 %v1060, 1.442695
    %v1062 = vpow.pop %v1061
    %v1063 = vadd.f32 %v1062, 1.0
    %v1064 = vrcp.pop %v1063
    %v1065 = vmul.f32 1.0, %v1064
    %v1066 = vtanh.pop %v1059
    %v1068 = vrot.slane %v973, 6
    %v1070 = vmul.f32 %v1065, %v1068
    %1072 = vrot.lane.b32.xlu0 %v1066, 64
    %v1073 = vpop.permute.xlu0 %1072
    %v1075 = vmul.f32 %v1065, %v1073
    %1077 = vrot.lane.b32.xlu0 %v1075, 32
    %v1078 = vpop.permute.xlu0 %1077
    %v1080 = vadd.f32 %v1070, %v1078
    %v1081 = vtanh.pop %v1080
    %1083 = vrot.lane.b32.xlu0 %v1081, 64
    %v1084 = vpop.permute.xlu0 %1083
    %v1086 = vmul.f32 %v1065, %v1084
    %v1088 = vrot.slane %v1086, 4
    %1089 = vrot.lane.b32.xlu0 %v1088, 32
    %v1090 = vpop.permute.xlu0 %1089
    %v1091 = vsel %vm351, %v1090, 0
    %1093 = vmatprep.subr.mxu0 0.0
    %1094 = vmatpush1.msra.mxu0 %v57
    %1095 = vmatprep.subr.mxu0 0.0
    %1096 = vmatpush1.msra.mxu0 %v58
    %1097 = vmatprep.subr.mxu0 0.0
    %1098 = vmatpush1.msra.mxu0 %v59
    %1099 = vmatprep.subr.mxu0 0.0
    %1100 = vmatpush1.msra.mxu0 %v60
    %1101 = vmatprep.subr.mxu0 0.0
    %1102 = vmatpush1.msra.mxu0 0.0
    %1103 = vmatprep.subr.mxu0 0.0
    %1104 = vmatpush1.msra.mxu0 0.0
    %1105 = vmatprep.subr.mxu0 0.0
    %1106 = vmatpush1.msra.mxu0 0.0
    %1107 = vmatprep.subr.mxu0 0.0
    %1108 = vmatpush1.msra.mxu0 0.0
    %1109 = vmatprep.subr.mxu0 0.0
    %1110 = vmatpush1.msra.mxu0 0.0
    %1111 = vmatprep.subr.mxu0 0.0
    %1112 = vmatpush1.msra.mxu0 0.0
    %1113 = vmatprep.subr.mxu0 0.0
    %1114 = vmatpush1.msra.mxu0 0.0
    %1115 = vmatprep.subr.mxu0 0.0
    %1116 = vmatpush1.msra.mxu0 0.0
    %1117 = vmatprep.subr.mxu0 0.0
    %1118 = vmatpush1.msra.mxu0 0.0
    %1119 = vmatprep.subr.mxu0 0.0
    %1120 = vmatpush1.msra.mxu0 0.0
    %1121 = vmatprep.subr.mxu0 0.0
    %1122 = vmatpush1.msra.mxu0 0.0
    %1123 = vmatprep.subr.mxu0 0.0
    %1124 = vmatpush1.msra.mxu0 0.0
    %1125 = vmatprep.subr.mxu0 0.0
    %1126 = vmatpush1.msra.mxu0 0.0
    %1127 = vmatprep.subr.mxu0 0.0
    %1128 = vmatpush1.msra.mxu0 0.0
    %1129 = vmatprep.subr.mxu0 0.0
    %1130 = vmatpush1.msra.mxu0 0.0
    %1131 = vmatprep.subr.mxu0 0.0
    %1132 = vmatpush1.msra.mxu0 0.0
    %1133 = vmatprep.subr.mxu0 0.0
    %1134 = vmatpush1.msra.mxu0 0.0
    %1135 = vmatprep.subr.mxu0 0.0
    %1136 = vmatpush1.msra.mxu0 0.0
    %1137 = vmatprep.subr.mxu0 0.0
    %1138 = vmatpush1.msra.mxu0 0.0
    %1139 = vmatprep.subr.mxu0 0.0
    %1140 = vmatpush1.msra.mxu0 0.0
    %1141 = vmatprep.subr.mxu0 0.0
    %1142 = vmatpush1.msra.mxu0 0.0
    %1143 = vmatprep.subr.mxu0 0.0
    %1144 = vmatpush1.msra.mxu0 0.0
    %1145 = vmatprep.subr.mxu0 0.0
    %1146 = vmatpush1.msra.mxu0 0.0
    %1147 = vmatprep.subr.mxu0 0.0
    %1148 = vmatpush1.msra.mxu0 0.0
    %1149 = vmatprep.subr.mxu0 0.0
    %1150 = vmatpush1.msra.mxu0 0.0
    %1151 = vmatprep.subr.mxu0 0.0
    %1152 = vmatpush1.msra.mxu0 0.0
    %1153 = vmatprep.subr.mxu0 0.0
    %1154 = vmatpush1.msra.mxu0 0.0
    %1155 = vmatprep.subr.mxu0 0.0
    %1156 = vmatpush1.msra.mxu0 0.0
    %1157 = vmatprep.mubr.f32.mxu0 0.0
    %1158 = vmatmul.mubr.f32.gmra.mrb[0].mxu0 %v1091
    %v1159 = vpop.f32.mrb[0].mxu0
    %v1160 = vadd.f32 0.0, %v1159
    %v1161 = vpop.f32.mrb[0].mxu0
    %1162 = vdwg.mxu0
    %v1164 = vrot.slane %v1160, 2
    %v1166 = vadd.f32 %v348, %v1164
    %v1167 = vxor.u32 %v1166, 2147483648
    %v1168 = vmul.f32 %v1167, 1.442695
    %v1169 = vpow.pop %v1168
    %v1170 = vadd.f32 %v1169, 1.0
    %v1171 = vrcp.pop %v1170
    %v1172 = vmul.f32 1.0, %v1171
    %v1173 = vtanh.pop %v1166
    %v1175 = vrot.slane %v1080, 6
    %v1177 = vmul.f32 %v1172, %v1175
    %1179 = vrot.lane.b32.xlu0 %v1173, 64
    %v1180 = vpop.permute.xlu0 %1179
    %v1182 = vmul.f32 %v1172, %v1180
    %1184 = vrot.lane.b32.xlu0 %v1182, 32
    %v1185 = vpop.permute.xlu0 %1184
    %v1187 = vadd.f32 %v1177, %v1185
    %v1188 = vtanh.pop %v1187
    %1190 = vrot.lane.b32.xlu0 %v1188, 64
    %v1191 = vpop.permute.xlu0 %1190
    %v1193 = vmul.f32 %v1172, %v1191
    %1195 = vrot.lane.b32.xlu0 %v1193, 32
    %v1196 = vpop.permute.xlu0 %1195
    %vm1198 = vcmask 261126
    %1199 = vst.msk [vmem:[#allocation2 - $0x6] sm:$0xc0] %vm1198, %v1196
    %v1200 = vrot.slane %v1193, 6
    %1201 = vrot.lane.b32.xlu0 %v1200, 32
    %v1202 = vpop.permute.xlu0 %1201
    %v1203 = vsel %vm351, %v1202, 0
    %1205 = vmatprep.subr.mxu0 0.0
    %1206 = vmatpush1.msra.mxu0 %v174
    %1207 = vmatprep.subr.mxu0 0.0
    %1208 = vmatpush1.msra.mxu0 %v175
    %1209 = vmatprep.subr.mxu0 0.0
    %1210 = vmatpush1.msra.mxu0 %v176
    %1211 = vmatprep.subr.mxu0 0.0
    %1212 = vmatpush1.msra.mxu0 %v177
    %1213 = vmatprep.subr.mxu0 0.0
    %1214 = vmatpush1.msra.mxu0 0.0
    %1215 = vmatprep.subr.mxu0 0.0
    %1216 = vmatpush1.msra.mxu0 0.0
    %1217 = vmatprep.subr.mxu0 0.0
    %1218 = vmatpush1.msra.mxu0 0.0
    %1219 = vmatprep.subr.mxu0 0.0
    %1220 = vmatpush1.msra.mxu0 0.0
    %1221 = vmatprep.subr.mxu0 0.0
    %1222 = vmatpush1.msra.mxu0 0.0
    %1223 = vmatprep.subr.mxu0 0.0
    %1224 = vmatpush1.msra.mxu0 0.0
    %1225 = vmatprep.subr.mxu0 0.0
    %1226 = vmatpush1.msra.mxu0 0.0
    %1227 = vmatprep.subr.mxu0 0.0
    %1228 = vmatpush1.msra.mxu0 0.0
    %1229 = vmatprep.subr.mxu0 0.0
    %1230 = vmatpush1.msra.mxu0 0.0
    %1231 = vmatprep.subr.mxu0 0.0
    %1232 = vmatpush1.msra.mxu0 0.0
    %1233 = vmatprep.subr.mxu0 0.0
    %1234 = vmatpush1.msra.mxu0 0.0
    %1235 = vmatprep.subr.mxu0 0.0
    %1236 = vmatpush1.msra.mxu0 0.0
    %1237 = vmatprep.subr.mxu0 0.0
    %1238 = vmatpush1.msra.mxu0 0.0
    %1239 = vmatprep.subr.mxu0 0.0
    %1240 = vmatpush1.msra.mxu0 0.0
    %1241 = vmatprep.subr.mxu0 0.0
    %1242 = vmatpush1.msra.mxu0 0.0
    %1243 = vmatprep.subr.mxu0 0.0
    %1244 = vmatpush1.msra.mxu0 0.0
    %1245 = vmatprep.subr.mxu0 0.0
    %1246 = vmatpush1.msra.mxu0 0.0
    %1247 = vmatprep.subr.mxu0 0.0
    %1248 = vmatpush1.msra.mxu0 0.0
    %1249 = vmatprep.subr.mxu0 0.0
    %1250 = vmatpush1.msra.mxu0 0.0
    %1251 = vmatprep.subr.mxu0 0.0
    %1252 = vmatpush1.msra.mxu0 0.0
    %1253 = vmatprep.subr.mxu0 0.0
    %1254 = vmatpush1.msra.mxu0 0.0
    %1255 = vmatprep.subr.mxu0 0.0
    %1256 = vmatpush1.msra.mxu0 0.0
    %1257 = vmatprep.subr.mxu0 0.0
    %1258 = vmatpush1.msra.mxu0 0.0
    %1259 = vmatprep.subr.mxu0 0.0
    %1260 = vmatpush1.msra.mxu0 0.0
    %1261 = vmatprep.subr.mxu0 0.0
    %1262 = vmatpush1.msra.mxu0 0.0
    %1263 = vmatprep.subr.mxu0 0.0
    %1264 = vmatpush1.msra.mxu0 0.0
    %1265 = vmatprep.subr.mxu0 0.0
    %1266 = vmatpush1.msra.mxu0 0.0
    %1267 = vmatprep.subr.mxu0 0.0
    %1268 = vmatpush1.msra.mxu0 0.0
    %1269 = vmatprep.mubr.f32.mxu0 0.0
    %1270 = vmatmul.mubr.f32.gmra.mrb[0].mxu0 %v1203
    %v1271 = vpop.f32.mrb[0].mxu0
    %v1272 = vadd.f32 %v257, %v1271
    %v1273 = vpop.f32.mrb[0].mxu0
    %1274 = vdwg.mxu0
    %v1275 = vxor.u32 %v1272, 2147483648
    %v1276 = vmul.f32 %v1275, 1.442695
    %v1277 = vpow.pop %v1276
    %v1278 = vadd.f32 %v1277, 1.0
    %v1279 = vrcp.pop %v1278
    %v1280 = vmul.f32 1.0, %v1279
    %v1281 = vtanh.pop %v1272
    %v1283 = vrot.slane %v1187, 6
    %v1285 = vmul.f32 %v1280, %v1283
    %1287 = vrot.lane.b32.xlu0 %v1281, 64
    %v1288 = vpop.permute.xlu0 %1287
    %v1290 = vmul.f32 %v1280, %v1288
    %1292 = vrot.lane.b32.xlu0 %v1290, 32
    %v1293 = vpop.permute.xlu0 %1292
    %v1295 = vadd.f32 %v1285, %v1293
    %v1296 = vtanh.pop %v1295
    %1298 = vrot.lane.b32.xlu0 %v1296, 64
    %v1299 = vpop.permute.xlu0 %1298
    %v1301 = vmul.f32 %v1280, %v1299
    %1303 = vrot.lane.b32.xlu0 %v1301, 32
    %v1304 = vpop.permute.xlu0 %1303
    %vm1306 = vcmask 254976
    %1307 = vst.msk [vmem:[#allocation2 + $0x2] sm:$0x3] %vm1306, %v1304
    %v1308 = vsel %vm351, %v1304, 0
    %1310 = vmatprep.subr.mxu0 0.0
    %1311 = vmatpush1.msra.mxu0 %v174
    %1312 = vmatprep.subr.mxu0 0.0
    %1313 = vmatpush1.msra.mxu0 %v175
    %1314 = vmatprep.subr.mxu0 0.0
    %1315 = vmatpush1.msra.mxu0 %v176
    %1316 = vmatprep.subr.mxu0 0.0
    %1317 = vmatpush1.msra.mxu0 %v177
    %1318 = vmatprep.subr.mxu0 0.0
    %1319 = vmatpush1.msra.mxu0 0.0
    %1320 = vmatprep.subr.mxu0 0.0
    %1321 = vmatpush1.msra.mxu0 0.0
    %1322 = vmatprep.subr.mxu0 0.0
    %1323 = vmatpush1.msra.mxu0 0.0
    %1324 = vmatprep.subr.mxu0 0.0
    %1325 = vmatpush1.msra.mxu0 0.0
    %1326 = vmatprep.subr.mxu0 0.0
    %1327 = vmatpush1.msra.mxu0 0.0
    %1328 = vmatprep.subr.mxu0 0.0
    %1329 = vmatpush1.msra.mxu0 0.0
    %1330 = vmatprep.subr.mxu0 0.0
    %1331 = vmatpush1.msra.mxu0 0.0
    %1332 = vmatprep.subr.mxu0 0.0
    %1333 = vmatpush1.msra.mxu0 0.0
    %1334 = vmatprep.subr.mxu0 0.0
    %1335 = vmatpush1.msra.mxu0 0.0
    %1336 = vmatprep.subr.mxu0 0.0
    %1337 = vmatpush1.msra.mxu0 0.0
    %1338 = vmatprep.subr.mxu0 0.0
    %1339 = vmatpush1.msra.mxu0 0.0
    %1340 = vmatprep.subr.mxu0 0.0
    %1341 = vmatpush1.msra.mxu0 0.0
    %1342 = vmatprep.subr.mxu0 0.0
    %1343 = vmatpush1.msra.mxu0 0.0
    %1344 = vmatprep.subr.mxu0 0.0
    %1345 = vmatpush1.msra.mxu0 0.0
    %1346 = vmatprep.subr.mxu0 0.0
    %1347 = vmatpush1.msra.mxu0 0.0
    %1348 = vmatprep.subr.mxu0 0.0
    %1349 = vmatpush1.msra.mxu0 0.0
    %1350 = vmatprep.subr.mxu0 0.0
    %1351 = vmatpush1.msra.mxu0 0.0
    %1352 = vmatprep.subr.mxu0 0.0
    %1353 = vmatpush1.msra.mxu0 0.0
    %1354 = vmatprep.subr.mxu0 0.0
    %1355 = vmatpush1.msra.mxu0 0.0
    %1356 = vmatprep.subr.mxu0 0.0
    %1357 = vmatpush1.msra.mxu0 0.0
    %1358 = vmatprep.subr.mxu0 0.0
    %1359 = vmatpush1.msra.mxu0 0.0
    %1360 = vmatprep.subr.mxu0 0.0
    %1361 = vmatpush1.msra.mxu0 0.0
    %1362 = vmatprep.subr.mxu0 0.0
    %1363 = vmatpush1.msra.mxu0 0.0
    %1364 = vmatprep.subr.mxu0 0.0
    %1365 = vmatpush1.msra.mxu0 0.0
    %1366 = vmatprep.subr.mxu0 0.0
    %1367 = vmatpush1.msra.mxu0 0.0
    %1368 = vmatprep.subr.mxu0 0.0
    %1369 = vmatpush1.msra.mxu0 0.0
    %1370 = vmatprep.subr.mxu0 0.0
    %1371 = vmatpush1.msra.mxu0 0.0
    %1372 = vmatprep.subr.mxu0 0.0
    %1373 = vmatpush1.msra.mxu0 0.0
    %1374 = vmatprep.mubr.f32.mxu0 0.0
    %1375 = vmatmul.mubr.f32.gmra.mrb[0].mxu0 %v1308
    %v1376 = vpop.f32.mrb[0].mxu0
    %v1377 = vadd.f32 %v257, %v1376
    %v1378 = vpop.f32.mrb[0].mxu0
    %1379 = vdwg.mxu0
    %v1380 = vxor.u32 %v1377, 2147483648
    %v1381 = vmul.f32 %v1380, 1.442695
    %v1382 = vpow.pop %v1381
    %v1383 = vadd.f32 %v1382, 1.0
    %v1384 = vrcp.pop %v1383
    %v1385 = vmul.f32 1.0, %v1384
    %v1386 = vtanh.pop %v1377
    %v1387 = vmul.f32 %v1385, %v1295
    %1389 = vrot.lane.b32.xlu0 %v1386, 64
    %v1390 = vpop.permute.xlu0 %1389
    %v1392 = vmul.f32 %v1385, %v1390
    %1394 = vrot.lane.b32.xlu0 %v1392, 32
    %v1395 = vpop.permute.xlu0 %1394
    %v1397 = vadd.f32 %v1387, %v1395
    %v1398 = vtanh.pop %v1397
    %1400 = vrot.lane.b32.xlu0 %v1398, 64
    %v1401 = vpop.permute.xlu0 %1400
    %v1403 = vmul.f32 %v1385, %v1401
    %1405 = vrot.lane.b32.xlu0 %v1403, 32
    %v1406 = vpop.permute.xlu0 %1405
    %1408 = vst.msk [vmem:[#allocation2 + $0x4] sm:$0x3] %vm1306, %v1406
    %v1409 = vsel %vm351, %v1406, 0
    %1411 = vmatprep.subr.mxu0 0.0
    %1412 = vmatpush1.msra.mxu0 %v174
    %1413 = vmatprep.subr.mxu0 0.0
    %1414 = vmatpush1.msra.mxu0 %v175
    %1415 = vmatprep.subr.mxu0 0.0
    %1416 = vmatpush1.msra.mxu0 %v176
    %1417 = vmatprep.subr.mxu0 0.0
    %1418 = vmatpush1.msra.mxu0 %v177
    %1419 = vmatprep.subr.mxu0 0.0
    %1420 = vmatpush1.msra.mxu0 0.0
    %1421 = vmatprep.subr.mxu0 0.0
    %1422 = vmatpush1.msra.mxu0 0.0
    %1423 = vmatprep.subr.mxu0 0.0
    %1424 = vmatpush1.msra.mxu0 0.0
    %1425 = vmatprep.subr.mxu0 0.0
    %1426 = vmatpush1.msra.mxu0 0.0
    %1427 = vmatprep.subr.mxu0 0.0
    %1428 = vmatpush1.msra.mxu0 0.0
    %1429 = vmatprep.subr.mxu0 0.0
    %1430 = vmatpush1.msra.mxu0 0.0
    %1431 = vmatprep.subr.mxu0 0.0
    %1432 = vmatpush1.msra.mxu0 0.0
    %1433 = vmatprep.subr.mxu0 0.0
    %1434 = vmatpush1.msra.mxu0 0.0
    %1435 = vmatprep.subr.mxu0 0.0
    %1436 = vmatpush1.msra.mxu0 0.0
    %1437 = vmatprep.subr.mxu0 0.0
    %1438 = vmatpush1.msra.mxu0 0.0
    %1439 = vmatprep.subr.mxu0 0.0
    %1440 = vmatpush1.msra.mxu0 0.0
    %1441 = vmatprep.subr.mxu0 0.0
    %1442 = vmatpush1.msra.mxu0 0.0
    %1443 = vmatprep.subr.mxu0 0.0
    %1444 = vmatpush1.msra.mxu0 0.0
    %1445 = vmatprep.subr.mxu0 0.0
    %1446 = vmatpush1.msra.mxu0 0.0
    %1447 = vmatprep.subr.mxu0 0.0
    %1448 = vmatpush1.msra.mxu0 0.0
    %1449 = vmatprep.subr.mxu0 0.0
    %1450 = vmatpush1.msra.mxu0 0.0
    %1451 = vmatprep.subr.mxu0 0.0
    %1452 = vmatpush1.msra.mxu0 0.0
    %1453 = vmatprep.subr.mxu0 0.0
    %1454 = vmatpush1.msra.mxu0 0.0
    %1455 = vmatprep.subr.mxu0 0.0
    %1456 = vmatpush1.msra.mxu0 0.0
    %1457 = vmatprep.subr.mxu0 0.0
    %1458 = vmatpush1.msra.mxu0 0.0
    %1459 = vmatprep.subr.mxu0 0.0
    %1460 = vmatpush1.msra.mxu0 0.0
    %1461 = vmatprep.subr.mxu0 0.0
    %1462 = vmatpush1.msra.mxu0 0.0
    %1463 = vmatprep.subr.mxu0 0.0
    %1464 = vmatpush1.msra.mxu0 0.0
    %1465 = vmatprep.subr.mxu0 0.0
    %1466 = vmatpush1.msra.mxu0 0.0
    %1467 = vmatprep.subr.mxu0 0.0
    %1468 = vmatpush1.msra.mxu0 0.0
    %1469 = vmatprep.subr.mxu0 0.0
    %1470 = vmatpush1.msra.mxu0 0.0
    %1471 = vmatprep.subr.mxu0 0.0
    %1472 = vmatpush1.msra.mxu0 0.0
    %1473 = vmatprep.subr.mxu0 0.0
    %1474 = vmatpush1.msra.mxu0 0.0
    %1475 = vmatprep.mubr.f32.mxu0 0.0
    %1476 = vmatmul.mubr.f32.gmra.mrb[0].mxu0 %v1409
    %v1477 = vpop.f32.mrb[0].mxu0
    %v1478 = vadd.f32 %v257, %v1477
    %v1479 = vpop.f32.mrb[0].mxu0
    %1480 = vdwg.mxu0
    %v1481 = vxor.u32 %v1478, 2147483648
    %v1482 = vmul.f32 %v1481, 1.442695
    %v1483 = vpow.pop %v1482
    %v1484 = vadd.f32 %v1483, 1.0
    %v1485 = vrcp.pop %v1484
    %v1486 = vmul.f32 1.0, %v1485
    %v1487 = vtanh.pop %v1478
    %v1488 = vmul.f32 %v1486, %v1397
    %1490 = vrot.lane.b32.xlu0 %v1487, 64
    %v1491 = vpop.permute.xlu0 %1490
    %v1493 = vmul.f32 %v1486, %v1491
    %1495 = vrot.lane.b32.xlu0 %v1493, 32
    %v1496 = vpop.permute.xlu0 %1495
    %v1498 = vadd.f32 %v1488, %v1496
    %v1499 = vtanh.pop %v1498
    %1501 = vrot.lane.b32.xlu0 %v1499, 64
    %v1502 = vpop.permute.xlu0 %1501
    %v1504 = vmul.f32 %v1486, %v1502
    %1506 = vrot.lane.b32.xlu0 %v1504, 32
    %v1507 = vpop.permute.xlu0 %1506
    %1509 = vst.msk [vmem:[#allocation2 + $0x6] sm:$0x3] %vm1306, %v1507
    %v1510 = vsel %vm351, %v1507, 0
    %1512 = vmatprep.subr.mxu0 0.0
    %1513 = vmatpush1.msra.mxu0 %v174
    %1514 = vmatprep.subr.mxu0 0.0
    %1515 = vmatpush1.msra.mxu0 %v175
    %1516 = vmatprep.subr.mxu0 0.0
    %1517 = vmatpush1.msra.mxu0 %v176
    %1518 = vmatprep.subr.mxu0 0.0
    %1519 = vmatpush1.msra.mxu0 %v177
    %1520 = vmatprep.subr.mxu0 0.0
    %1521 = vmatpush1.msra.mxu0 0.0
    %1522 = vmatprep.subr.mxu0 0.0
    %1523 = vmatpush1.msra.mxu0 0.0
    %1524 = vmatprep.subr.mxu0 0.0
    %1525 = vmatpush1.msra.mxu0 0.0
    %1526 = vmatprep.subr.mxu0 0.0
    %1527 = vmatpush1.msra.mxu0 0.0
    %1528 = vmatprep.subr.mxu0 0.0
    %1529 = vmatpush1.msra.mxu0 0.0
    %1530 = vmatprep.subr.mxu0 0.0
    %1531 = vmatpush1.msra.mxu0 0.0
    %1532 = vmatprep.subr.mxu0 0.0
    %1533 = vmatpush1.msra.mxu0 0.0
    %1534 = vmatprep.subr.mxu0 0.0
    %1535 = vmatpush1.msra.mxu0 0.0
    %1536 = vmatprep.subr.mxu0 0.0
    %1537 = vmatpush1.msra.mxu0 0.0
    %1538 = vmatprep.subr.mxu0 0.0
    %1539 = vmatpush1.msra.mxu0 0.0
    %1540 = vmatprep.subr.mxu0 0.0
    %1541 = vmatpush1.msra.mxu0 0.0
    %1542 = vmatprep.subr.mxu0 0.0
    %1543 = vmatpush1.msra.mxu0 0.0
    %1544 = vmatprep.subr.mxu0 0.0
    %1545 = vmatpush1.msra.mxu0 0.0
    %1546 = vmatprep.subr.mxu0 0.0
    %1547 = vmatpush1.msra.mxu0 0.0
    %1548 = vmatprep.subr.mxu0 0.0
    %1549 = vmatpush1.msra.mxu0 0.0
    %1550 = vmatprep.subr.mxu0 0.0
    %1551 = vmatpush1.msra.mxu0 0.0
    %1552 = vmatprep.subr.mxu0 0.0
    %1553 = vmatpush1.msra.mxu0 0.0
    %1554 = vmatprep.subr.mxu0 0.0
    %1555 = vmatpush1.msra.mxu0 0.0
    %1556 = vmatprep.subr.mxu0 0.0
    %1557 = vmatpush1.msra.mxu0 0.0
    %1558 = vmatprep.subr.mxu0 0.0
    %1559 = vmatpush1.msra.mxu0 0.0
    %1560 = vmatprep.subr.mxu0 0.0
    %1561 = vmatpush1.msra.mxu0 0.0
    %1562 = vmatprep.subr.mxu0 0.0
    %1563 = vmatpush1.msra.mxu0 0.0
    %1564 = vmatprep.subr.mxu0 0.0
    %1565 = vmatpush1.msra.mxu0 0.0
    %1566 = vmatprep.subr.mxu0 0.0
    %1567 = vmatpush1.msra.mxu0 0.0
    %1568 = vmatprep.subr.mxu0 0.0
    %1569 = vmatpush1.msra.mxu0 0.0
    %1570 = vmatprep.subr.mxu0 0.0
    %1571 = vmatpush1.msra.mxu0 0.0
    %1572 = vmatprep.subr.mxu0 0.0
    %1573 = vmatpush1.msra.mxu0 0.0
    %1574 = vmatprep.subr.mxu0 0.0
    %1575 = vmatpush1.msra.mxu0 0.0
    %1576 = vmatprep.mubr.f32.mxu0 0.0
    %1577 = vmatmul.mubr.f32.gmra.mrb[0].mxu0 %v1510
    %v1578 = vpop.f32.mrb[0].mxu0
    %v1579 = vadd.f32 %v257, %v1578
    %v1580 = vpop.f32.mrb[0].mxu0
    %1581 = vdwg.mxu0
    %v1582 = vxor.u32 %v1579, 2147483648
    %v1583 = vmul.f32 %v1582, 1.442695
    %v1584 = vpow.pop %v1583
    %v1585 = vadd.f32 %v1584, 1.0
    %v1586 = vrcp.pop %v1585
    %v1587 = vmul.f32 1.0, %v1586
    %v1588 = vtanh.pop %v1579
    %v1589 = vmul.f32 %v1587, %v1498
    %1591 = vrot.lane.b32.xlu0 %v1588, 64
    %v1592 = vpop.permute.xlu0 %1591
    %v1594 = vmul.f32 %v1587, %v1592
    %1596 = vrot.lane.b32.xlu0 %v1594, 32
    %v1597 = vpop.permute.xlu0 %1596
    %v1599 = vadd.f32 %v1589, %v1597
    %v1600 = vtanh.pop %v1599
    %1602 = vrot.lane.b32.xlu0 %v1600, 64
    %v1603 = vpop.permute.xlu0 %1602
    %v1605 = vmul.f32 %v1587, %v1603
    %1607 = vrot.lane.b32.xlu0 %v1605, 32
    %v1608 = vpop.permute.xlu0 %1607
    %1610 = vst.msk [vmem:[#allocation2 + $0x8] sm:$0x3] %vm1306, %v1608
    %v1611 = vsel %vm351, %v1608, 0
    %1613 = vmatprep.subr.mxu0 0.0
    %1614 = vmatpush1.msra.mxu0 %v174
    %1615 = vmatprep.subr.mxu0 0.0
    %1616 = vmatpush1.msra.mxu0 %v175
    %1617 = vmatprep.subr.mxu0 0.0
    %1618 = vmatpush1.msra.mxu0 %v176
    %1619 = vmatprep.subr.mxu0 0.0
    %1620 = vmatpush1.msra.mxu0 %v177
    %1621 = vmatprep.subr.mxu0 0.0
    %1622 = vmatpush1.msra.mxu0 0.0
    %1623 = vmatprep.subr.mxu0 0.0
    %1624 = vmatpush1.msra.mxu0 0.0
    %1625 = vmatprep.subr.mxu0 0.0
    %1626 = vmatpush1.msra.mxu0 0.0
    %1627 = vmatprep.subr.mxu0 0.0
    %1628 = vmatpush1.msra.mxu0 0.0
    %1629 = vmatprep.subr.mxu0 0.0
    %1630 = vmatpush1.msra.mxu0 0.0
    %1631 = vmatprep.subr.mxu0 0.0
    %1632 = vmatpush1.msra.mxu0 0.0
    %1633 = vmatprep.subr.mxu0 0.0
    %1634 = vmatpush1.msra.mxu0 0.0
    %1635 = vmatprep.subr.mxu0 0.0
    %1636 = vmatpush1.msra.mxu0 0.0
    %1637 = vmatprep.subr.mxu0 0.0
    %1638 = vmatpush1.msra.mxu0 0.0
    %1639 = vmatprep.subr.mxu0 0.0
    %1640 = vmatpush1.msra.mxu0 0.0
    %1641 = vmatprep.subr.mxu0 0.0
    %1642 = vmatpush1.msra.mxu0 0.0
    %1643 = vmatprep.subr.mxu0 0.0
    %1644 = vmatpush1.msra.mxu0 0.0
    %1645 = vmatprep.subr.mxu0 0.0
    %1646 = vmatpush1.msra.mxu0 0.0
    %1647 = vmatprep.subr.mxu0 0.0
    %1648 = vmatpush1.msra.mxu0 0.0
    %1649 = vmatprep.subr.mxu0 0.0
    %1650 = vmatpush1.msra.mxu0 0.0
    %1651 = vmatprep.subr.mxu0 0.0
    %1652 = vmatpush1.msra.mxu0 0.0
    %1653 = vmatprep.subr.mxu0 0.0
    %1654 = vmatpush1.msra.mxu0 0.0
    %1655 = vmatprep.subr.mxu0 0.0
    %1656 = vmatpush1.msra.mxu0 0.0
    %1657 = vmatprep.subr.mxu0 0.0
    %1658 = vmatpush1.msra.mxu0 0.0
    %1659 = vmatprep.subr.mxu0 0.0
    %1660 = vmatpush1.msra.mxu0 0.0
    %1661 = vmatprep.subr.mxu0 0.0
    %1662 = vmatpush1.msra.mxu0 0.0
    %1663 = vmatprep.subr.mxu0 0.0
    %1664 = vmatpush1.msra.mxu0 0.0
    %1665 = vmatprep.subr.mxu0 0.0
    %1666 = vmatpush1.msra.mxu0 0.0
    %1667 = vmatprep.subr.mxu0 0.0
    %1668 = vmatpush1.msra.mxu0 0.0
    %1669 = vmatprep.subr.mxu0 0.0
    %1670 = vmatpush1.msra.mxu0 0.0
    %1671 = vmatprep.subr.mxu0 0.0
    %1672 = vmatpush1.msra.mxu0 0.0
    %1673 = vmatprep.subr.mxu0 0.0
    %1674 = vmatpush1.msra.mxu0 0.0
    %1675 = vmatprep.subr.mxu0 0.0
    %1676 = vmatpush1.msra.mxu0 0.0
    %1677 = vmatprep.mubr.f32.mxu0 0.0
    %1678 = vmatmul.mubr.f32.gmra.mrb[0].mxu0 %v1611
    %v1679 = vpop.f32.mrb[0].mxu0
    %v1680 = vadd.f32 %v257, %v1679
    %v1681 = vpop.f32.mrb[0].mxu0
    %1682 = vdwg.mxu0
    %v1683 = vxor.u32 %v1680, 2147483648
    %v1684 = vmul.f32 %v1683, 1.442695
    %v1685 = vpow.pop %v1684
    %v1686 = vadd.f32 %v1685, 1.0
    %v1687 = vrcp.pop %v1686
    %v1688 = vmul.f32 1.0, %v1687
    %v1689 = vtanh.pop %v1680
    %v1690 = vmul.f32 %v1688, %v1599
    %1692 = vrot.lane.b32.xlu0 %v1689, 64
    %v1693 = vpop.permute.xlu0 %1692
    %v1695 = vmul.f32 %v1688, %v1693
    %1697 = vrot.lane.b32.xlu0 %v1695, 32
    %v1698 = vpop.permute.xlu0 %1697
    %v1700 = vadd.f32 %v1690, %v1698
    %v1701 = vtanh.pop %v1700
    %1703 = vrot.lane.b32.xlu0 %v1701, 64
    %v1704 = vpop.permute.xlu0 %1703
    %v1706 = vmul.f32 %v1688, %v1704
    %1708 = vrot.lane.b32.xlu0 %v1706, 32
    %v1709 = vpop.permute.xlu0 %1708
    %1711 = vst.msk [vmem:[#allocation2 + $0xa] sm:$0x3] %vm1306, %v1709
    %v1712 = vld [vmem:[#allocation2] sm:$0xff]
    %v1713 = vld [vmem:[#allocation2 + $0x8] sm:$0xf]
    %v1714 = vlaneseq
    %v1715 = vshrl.u32 %v1714, 7
    %v1716 = vsub.s32 0, %v1715
    %v1717 = vrot.slane %v66, %v1716
    %v1720 = vsel %vm351, %v1712, 0
    %v1723 = vsel %vm351, %v1713, 0
    %1725 = vmatprep.subr.mxu0 0.0
    %1726 = vmatpush1.msra.mxu0 %v62
    %1727 = vmatprep.subr.mxu0 0.0
    %1728 = vmatpush1.msra.mxu0 %v63
    %1729 = vmatprep.subr.mxu0 0.0
    %1730 = vmatpush1.msra.mxu0 %v64
    %1731 = vmatprep.subr.mxu0 0.0
    %1732 = vmatpush1.msra.mxu0 %v65
    %1733 = vmatprep.subr.mxu0 0.0
    %1734 = vmatpush1.msra.mxu0 0.0
    %1735 = vmatprep.subr.mxu0 0.0
    %1736 = vmatpush1.msra.mxu0 0.0
    %1737 = vmatprep.subr.mxu0 0.0
    %1738 = vmatpush1.msra.mxu0 0.0
    %1739 = vmatprep.subr.mxu0 0.0
    %1740 = vmatpush1.msra.mxu0 0.0
    %1741 = vmatprep.subr.mxu0 0.0
    %1742 = vmatpush1.msra.mxu0 0.0
    %1743 = vmatprep.subr.mxu0 0.0
    %1744 = vmatpush1.msra.mxu0 0.0
    %1745 = vmatprep.subr.mxu0 0.0
    %1746 = vmatpush1.msra.mxu0 0.0
    %1747 = vmatprep.subr.mxu0 0.0
    %1748 = vmatpush1.msra.mxu0 0.0
    %1749 = vmatprep.subr.mxu0 0.0
    %1750 = vmatpush1.msra.mxu0 0.0
    %1751 = vmatprep.subr.mxu0 0.0
    %1752 = vmatpush1.msra.mxu0 0.0
    %1753 = vmatprep.subr.mxu0 0.0
    %1754 = vmatpush1.msra.mxu0 0.0
    %1755 = vmatprep.subr.mxu0 0.0
    %1756 = vmatpush1.msra.mxu0 0.0
    %1757 = vmatprep.subr.mxu0 0.0
    %1758 = vmatpush1.msra.mxu0 0.0
    %1759 = vmatprep.subr.mxu0 0.0
    %1760 = vmatpush1.msra.mxu0 0.0
    %1761 = vmatprep.subr.mxu0 0.0
    %1762 = vmatpush1.msra.mxu0 0.0
    %1763 = vmatprep.subr.mxu0 0.0
    %1764 = vmatpush1.msra.mxu0 0.0
    %1765 = vmatprep.subr.mxu0 0.0
    %1766 = vmatpush1.msra.mxu0 0.0
    %1767 = vmatprep.subr.mxu0 0.0
    %1768 = vmatpush1.msra.mxu0 0.0
    %1769 = vmatprep.subr.mxu0 0.0
    %1770 = vmatpush1.msra.mxu0 0.0
    %1771 = vmatprep.subr.mxu0 0.0
    %1772 = vmatpush1.msra.mxu0 0.0
    %1773 = vmatprep.subr.mxu0 0.0
    %1774 = vmatpush1.msra.mxu0 0.0
    %1775 = vmatprep.subr.mxu0 0.0
    %1776 = vmatpush1.msra.mxu0 0.0
    %1777 = vmatprep.subr.mxu0 0.0
    %1778 = vmatpush1.msra.mxu0 0.0
    %1779 = vmatprep.subr.mxu0 0.0
    %1780 = vmatpush1.msra.mxu0 0.0
    %1781 = vmatprep.subr.mxu0 0.0
    %1782 = vmatpush1.msra.mxu0 0.0
    %1783 = vmatprep.subr.mxu0 0.0
    %1784 = vmatpush1.msra.mxu0 0.0
    %1785 = vmatprep.subr.mxu0 0.0
    %1786 = vmatpush1.msra.mxu0 0.0
    %1787 = vmatprep.subr.mxu0 0.0
    %1788 = vmatpush1.msra.mxu0 0.0
    %1789 = vmatprep.mubr.f32.mxu0 0.0
    %1790 = vmatmul.mubr.f32.gmra.mrb[0].mxu0 %v1720
    %v1791 = vpop.f32.mrb[0].mxu0
    %v1792 = vadd.f32 %v1717, %v1791
    %v1793 = vpop.f32.mrb[0].mxu0
    %1794 = vmatprep.mubr.f32.mxu0 0.0
    %1795 = vmatmul.mubr.f32.gmra.mrb[0].mxu0 %v1723
    %v1796 = vpop.f32.mrb[0].mxu0
    %v1797 = vadd.f32 %v1717, %v1796
    %v1798 = vpop.f32.mrb[0].mxu0
    %1799 = vdwg.mxu0
    %1800 = vst.msk [vmem:[%s9] sm:$0xff] %vm72, %v1792
    %vm1801 = vcmask 27648
    %1802 = vst.msk [vmem:[%s9 + $0x8] sm:$0xf] %vm1801, %v1797
    // Predicated region
    $region46: #{tpu_custom_call.1} parent=1 // pred_check
      _
    $region47: #{tpu_custom_call.1} parent=1 // pred_check_branch
      %1804 = sbr.rel (0) target = $region49
    $region48: #{tpu_custom_call.1} parent=1 // pred_region
      _
    $region49: #{tpu_custom_call.1} parent=1 // pred_fallthru
      _
    // Predicated region
    $region50: #{tpu_custom_call.1} parent=1 // pred_check
      _
    $region51: #{tpu_custom_call.1} parent=1 // pred_check_branch
      %1806 = sbr.rel (0) target = $region53
    $region52: #{tpu_custom_call.1} parent=1 // pred_region
      _
    $region53: #{tpu_custom_call.1} parent=1 // pred_fallthru
      _
    %1807 = vsyncpa [#allocation4], 1
    %1808 = vsyncpa [#allocation6], 1

</llo_original>
